<compile_context>
chip_gen: v5e
topology: v5e:2x2
jax: 0.10.0
libtpu: 0.0.40
codegen_flags: <defaults>
</compile_context>

<pallas_src>
import functools

import jax
import jax.numpy as jnp
from jax.experimental import pallas as pl
from jax.experimental.pallas import tpu as pltpu


# ---------------------------------------------------------------------------
# Pallas kernel (used for conv1 and conv2): fused  out = act(x @ w + b)
# ---------------------------------------------------------------------------
def _matmul_bias_act_kernel(x_ref, w_ref, b_ref, o_ref, *, activation):
    acc = jnp.dot(x_ref[...], w_ref[...], preferred_element_type=jnp.float32)
    acc = acc + b_ref[...]                       # (1, N) broadcasts over rows
    if activation == "relu":
        acc = jnp.maximum(acc, 0.0)
    o_ref[...] = acc.astype(o_ref.dtype)


def matmul_bias_act(x, w, b, activation="none"):
    """act(x @ w + b) in a single pallas_call; all operands live in VMEM."""
    M, K = x.shape
    K2, N = w.shape
    assert K == K2
    b2 = b.reshape(1, N).astype(jnp.float32)
    kernel = functools.partial(_matmul_bias_act_kernel, activation=activation)
    cost = pl.CostEstimate(
        flops=2 * M * K * N,
        transcendentals=0,
        bytes_accessed=4 * (M * K + K * N + N + M * N),
    )
    return pl.pallas_call(
        kernel,
        out_shape=jax.ShapeDtypeStruct((M, N), jnp.float32),
        grid=(1,),
        in_specs=[
            pl.BlockSpec((M, K), lambda i: (0, 0)),   # tiny shapes: full-array blocks
            pl.BlockSpec((K, N), lambda i: (0, 0)),
            pl.BlockSpec((1, N), lambda i: (0, 0)),
        ],
        out_specs=pl.BlockSpec((M, N), lambda i: (0, 0)),
        compiler_params=pltpu.CompilerParams(
            dimension_semantics=("arbitrary",),
            vmem_limit_bytes=32 * 1024 * 1024),
        cost_estimate=cost,
    )(x.astype(jnp.float32), w.astype(jnp.float32), b2)


# ---------------------------------------------------------------------------
# Pallas kernel: fused fc + ReLU + (fc_mu | fc_logvar) heads
#   hidden = relu(h_flat @ Wh + y @ Wy + b_fc)          (stays in VMEM/vregs)
#   out    = hidden @ [W_mu | W_logvar] + [b_mu | b_logvar]
# ---------------------------------------------------------------------------
def _fc_heads_kernel(h_ref, y_ref, wh_ref, wy_ref, bfc_ref, whd_ref, bhd_ref, o_ref):
    acc = jnp.dot(h_ref[...], wh_ref[...], preferred_element_type=jnp.float32)
    acc = acc + jnp.dot(y_ref[...], wy_ref[...], preferred_element_type=jnp.float32)
    hidden = jnp.maximum(acc + bfc_ref[...], 0.0)
    out = jnp.dot(hidden, whd_ref[...], preferred_element_type=jnp.float32) + bhd_ref[...]
    o_ref[...] = out.astype(o_ref.dtype)


def fc_heads(h_flat, y, w_h, w_y, b_fc, w_heads, b_heads):
    B, F = h_flat.shape
    _, NY = y.shape
    H = w_h.shape[1]
    NO = w_heads.shape[1]
    cost = pl.CostEstimate(
        flops=2 * B * (F * H + NY * H + H * NO),
        transcendentals=0,
        bytes_accessed=4 * (B * F + B * NY + F * H + NY * H + H + H * NO + NO + B * NO),
    )
    return pl.pallas_call(
        _fc_heads_kernel,
        out_shape=jax.ShapeDtypeStruct((B, NO), jnp.float32),
        grid=(1,),
        in_specs=[
            pl.BlockSpec((B, F), lambda i: (0, 0)),
            pl.BlockSpec((B, NY), lambda i: (0, 0)),
            pl.BlockSpec((F, H), lambda i: (0, 0)),
            pl.BlockSpec((NY, H), lambda i: (0, 0)),
            pl.BlockSpec((1, H), lambda i: (0, 0)),
            pl.BlockSpec((H, NO), lambda i: (0, 0)),
            pl.BlockSpec((1, NO), lambda i: (0, 0)),
        ],
        out_specs=pl.BlockSpec((B, NO), lambda i: (0, 0)),
        compiler_params=pltpu.CompilerParams(
            dimension_semantics=("arbitrary",),
            vmem_limit_bytes=32 * 1024 * 1024),
        cost_estimate=cost,
    )(h_flat, y, w_h, w_y, b_fc.reshape(1, H).astype(jnp.float32),
      w_heads, b_heads.reshape(1, NO).astype(jnp.float32))


# ---------------------------------------------------------------------------
# Encoder forward (matches the PyTorch module semantics)
# ---------------------------------------------------------------------------
def encoder_forward(x, y, p, *, hidden_channels, latent_dim):
    B = x.shape[0]
    hc = hidden_channels
    hc2 = hc * 2

    # ---- conv1 (1 -> hc, k=4, s=2, p=1): im2col glue + fused Pallas matmul ----
    x2 = x.reshape(B, 28, 28)                               # Cin == 1
    xp = jnp.pad(x2, ((0, 0), (1, 1), (1, 1)))              # (B, 30, 30)
    taps = []
    for kh in range(4):
        for kw in range(4):
            taps.append(xp[:, kh:kh + 27:2, kw:kw + 27:2])  # (B, 14, 14)
    p1 = jnp.stack(taps, axis=-1).reshape(B * 196, 16)      # rows=(b,oh,ow), cols=kh*4+kw
    w1m = p["w_c1"].reshape(hc, 16).T                       # (16, hc) : [kh*4+kw, co]
    h1 = matmul_bias_act(p1, w1m, p["b_c1"], "relu")        # (B*196, hc), channel-last

    # ---- conv2 (hc -> 2hc, k=4, s=2, p=1): im2col glue + fused Pallas matmul ----
    h1 = h1.reshape(B, 14, 14, hc)
    h1p = jnp.pad(h1, ((0, 0), (1, 1), (1, 1), (0, 0)))     # (B, 16, 16, hc)
    taps = []
    for kh in range(4):
        for kw in range(4):
            taps.append(h1p[:, kh:kh + 13:2, kw:kw + 13:2, :])   # (B, 7, 7, hc)
    p2 = jnp.concatenate(taps, axis=-1).reshape(B * 49, 16 * hc)  # cols=(kh*4+kw)*hc+ci
    w2m = p["w_c2"].transpose(2, 3, 1, 0).reshape(16 * hc, hc2)   # [kh,kw,ci,co]
    h2 = matmul_bias_act(p2, w2m, p["b_c2"], "relu")              # (B*49, hc2)

    # ---- flatten (channel-last) + fused fc/ReLU/mu/logvar Pallas kernel ----
    feat = hc2 * 49
    h2_flat = h2.reshape(B, feat)                           # order: s*hc2 + c
    # permute fc weight rows from the PyTorch NCHW flatten order (c*49+s) to (s*hc2+c)
    w_fc_h = p["w_fc"][:feat].reshape(hc2, 49, 64).transpose(1, 0, 2).reshape(feat, 64)
    w_fc_y = p["w_fc"][feat:]                               # (num_labels, 64)
    w_heads = jnp.concatenate([p["w_mu"], p["w_lv"]], axis=1)     # (64, 2L) lane-dense heads
    b_heads = jnp.concatenate([p["b_mu"], p["b_lv"]], axis=0)     # (2L,)
    out = fc_heads(h2_flat, y, w_fc_h, w_fc_y, p["b_fc"], w_heads, b_heads)  # (B, 2L)
    mu = out[:, :latent_dim]
    logvar = out[:, latent_dim:]
    return mu, logvar


# ---------------------------------------------------------------------------
# Deterministic parameter init + pure-JAX reference for verification
# ---------------------------------------------------------------------------
def init_params(key, hidden_channels, latent_dim, num_labels):
    hc = hidden_channels
    hc2 = hc * 2
    feat = hc2 * 7 * 7
    keys = jax.random.split(key, 10)

    def w(k, shape, fan_in):
        return jax.random.normal(k, shape, jnp.float32) / jnp.sqrt(float(fan_in))

    return {
        "w_c1": w(keys[0], (hc, 1, 4, 4), 16),
        "b_c1": w(keys[1], (hc,), 16),
        "w_c2": w(keys[2], (hc2, hc, 4, 4), hc * 16),
        "b_c2": w(keys[3], (hc2,), hc * 16),
        "w_fc": w(keys[4], (feat + num_labels, 64), feat + num_labels),
        "b_fc": w(keys[5], (64,), 64),
        "w_mu": w(keys[6], (64, latent_dim), 64),
        "b_mu": w(keys[7], (latent_dim,), 64),
        "w_lv": w(keys[8], (64, latent_dim), 64),
        "b_lv": w(keys[9], (latent_dim,), 64),
    }


def _conv2d_ref(x, w, b, stride=2, padding=1):
    out = jax.lax.conv_general_dilated(
        x, w, window_strides=(stride, stride),
        padding=[(padding, padding), (padding, padding)],
        dimension_numbers=("NCHW", "OIHW", "NCHW"))
    return out + b[None, :, None, None]


def encoder_ref(x, y, p):
    B = x.shape[0]
    h = jnp.maximum(_conv2d_ref(x, p["w_c1"], p["b_c1"]), 0.0)
    h = jnp.maximum(_conv2d_ref(h, p["w_c2"], p["b_c2"]), 0.0)
    h = h.reshape(B, -1)                                    # PyTorch NCHW flatten
    h = jnp.concatenate([h, y], axis=1)
    h = jnp.maximum(h @ p["w_fc"] + p["b_fc"], 0.0)
    mu = h @ p["w_mu"] + p["b_mu"]
    logvar = h @ p["w_lv"] + p["b_lv"]
    return mu, logvar


# ---------------------------------------------------------------------------
if __name__ == "__main__":
    hidden_channels = 12
    latent_dim = 16
    num_labels = 10
    batch = 2

    key = jax.random.PRNGKey(0)
    k_param, k_x, k_y = jax.random.split(key, 3)
    params = init_params(k_param, hidden_channels, latent_dim, num_labels)
    x = jax.random.normal(k_x, (batch, 1, 28, 28), jnp.float32)
    y = jax.nn.one_hot(
        jax.random.randint(k_y, (batch,), 0, num_labels), num_labels, dtype=jnp.float32)

    fwd = jax.jit(functools.partial(
        encoder_forward, hidden_channels=hidden_channels, latent_dim=latent_dim))
    mu, logvar = fwd(x, y, params)
    jax.block_until_ready((mu, logvar))

    assert mu.shape == (batch, latent_dim), mu.shape
    assert logvar.shape == (batch, latent_dim), logvar.shape

    mu_ref, lv_ref = encoder_ref(x, y, params)
    assert jnp.allclose(mu, mu_ref, atol=2e-4, rtol=2e-4), float(jnp.max(jnp.abs(mu - mu_ref)))
    assert jnp.allclose(logvar, lv_ref, atol=2e-4, rtol=2e-4), float(jnp.max(jnp.abs(logvar - lv_ref)))

    print("KERNEL_OK")
</pallas_src>

<mosaic_0001>
module attributes {stable_mosaic.version = 11 : i64} {
  func.func @_matmul_bias_act_kernel(%arg0: i32, %arg1: memref<392x16xf32, #tpu.memory_space<vmem>>, %arg2: memref<16x12xf32, #tpu.memory_space<vmem>>, %arg3: memref<1x12xf32, #tpu.memory_space<vmem>>, %arg4: memref<392x12xf32, #tpu.memory_space<vmem>>) attributes {dimension_semantics = [#tpu.dimension_semantics<arbitrary>], iteration_bounds = array<i64: 1>, scalar_prefetch = 0 : i64, scratch_operands = 0 : i64, tpu.core_type = #tpu.core_type<tc>, window_params = [{pipeline_mode = #tpu.pipeline_mode<synchronous>, transform_indices = @transform_0, window_bounds = array<i64: 392, 16>}, {pipeline_mode = #tpu.pipeline_mode<synchronous>, transform_indices = @transform_1, window_bounds = array<i64: 16, 12>}, {pipeline_mode = #tpu.pipeline_mode<synchronous>, transform_indices = @transform_2, window_bounds = array<i64: 1, 12>}, {pipeline_mode = #tpu.pipeline_mode<synchronous>, transform_indices = @transform_3, window_bounds = array<i64: 392, 12>}]} {
    %c0 = arith.constant 0 : index
    %c0_0 = arith.constant 0 : index
    %0 = vector.load %arg1[%c0, %c0_0] : memref<392x16xf32, #tpu.memory_space<vmem>>, vector<392x16xf32>
    %c0_1 = arith.constant 0 : index
    %c0_2 = arith.constant 0 : index
    %1 = vector.load %arg2[%c0_1, %c0_2] : memref<16x12xf32, #tpu.memory_space<vmem>>, vector<16x12xf32>
    %cst = arith.constant dense<0.000000e+00> : vector<392x12xf32>
    %2 = tpu.matmul %0, %1, %cst {dimension_numbers = #tpu.dot_dimension_numbers<[1], [0], [0], [1], [0, 0, 1, 1], [], []>} : vector<392x16xf32>, vector<16x12xf32>, vector<392x12xf32> -> vector<392x12xf32>
    %c0_3 = arith.constant 0 : index
    %c0_4 = arith.constant 0 : index
    %3 = vector.load %arg3[%c0_3, %c0_4] : memref<1x12xf32, #tpu.memory_space<vmem>>, vector<1x12xf32>
    %4 = vector.broadcast %3 : vector<1x12xf32> to vector<392x12xf32>
    %5 = arith.addf %2, %4 : vector<392x12xf32>
    %cst_5 = arith.constant 0.000000e+00 : f32
    %6 = vector.broadcast %cst_5 : f32 to vector<392x12xf32>
    %7 = arith.maximumf %5, %6 : vector<392x12xf32>
    %c0_6 = arith.constant 0 : index
    %c0_7 = arith.constant 0 : index
    %8 = vector.load %arg4[%c0_6, %c0_7] : memref<392x12xf32, #tpu.memory_space<vmem>>, vector<392x12xf32>
    tpu.vector_store %arg4[%c0_6, %c0_7], %7 {strides = array<i32>} : memref<392x12xf32, #tpu.memory_space<vmem>>, vector<392x12xf32>,
    return
  }
  func.func @transform_0(%arg0: i32) -> (i32, i32) {
    %c0_i32 = arith.constant 0 : i32
    %c0_i32_0 = arith.constant 0 : i32
    %c0_i32_1 = arith.constant 0 : i32
    return %c0_i32, %c0_i32_0 : i32, i32
  }
  func.func @transform_1(%arg0: i32) -> (i32, i32) {
    %c0_i32 = arith.constant 0 : i32
    %c0_i32_0 = arith.constant 0 : i32
    %c0_i32_1 = arith.constant 0 : i32
    return %c0_i32, %c0_i32_0 : i32, i32
  }
  func.func @transform_2(%arg0: i32) -> (i32, i32) {
    %c0_i32 = arith.constant 0 : i32
    %c0_i32_0 = arith.constant 0 : i32
    %c0_i32_1 = arith.constant 0 : i32
    return %c0_i32, %c0_i32_0 : i32, i32
  }
  func.func @transform_3(%arg0: i32) -> (i32, i32) {
    %c0_i32 = arith.constant 0 : i32
    %c0_i32_0 = arith.constant 0 : i32
    %c0_i32_1 = arith.constant 0 : i32
    return %c0_i32, %c0_i32_0 : i32, i32
  }
}

module attributes {stable_mosaic.version = 11 : i64} {
  func.func @_matmul_bias_act_kernel(%arg0: i32, %arg1: memref<98x192xf32, #tpu.memory_space<vmem>>, %arg2: memref<192x24xf32, #tpu.memory_space<vmem>>, %arg3: memref<1x24xf32, #tpu.memory_space<vmem>>, %arg4: memref<98x24xf32, #tpu.memory_space<vmem>>) attributes {dimension_semantics = [#tpu.dimension_semantics<arbitrary>], iteration_bounds = array<i64: 1>, scalar_prefetch = 0 : i64, scratch_operands = 0 : i64, tpu.core_type = #tpu.core_type<tc>, window_params = [{pipeline_mode = #tpu.pipeline_mode<synchronous>, transform_indices = @transform_0, window_bounds = array<i64: 98, 192>}, {pipeline_mode = #tpu.pipeline_mode<synchronous>, transform_indices = @transform_1, window_bounds = array<i64: 192, 24>}, {pipeline_mode = #tpu.pipeline_mode<synchronous>, transform_indices = @transform_2, window_bounds = array<i64: 1, 24>}, {pipeline_mode = #tpu.pipeline_mode<synchronous>, transform_indices = @transform_3, window_bounds = array<i64: 98, 24>}]} {
    %c0 = arith.constant 0 : index
    %c0_0 = arith.constant 0 : index
    %0 = vector.load %arg1[%c0, %c0_0] : memref<98x192xf32, #tpu.memory_space<vmem>>, vector<98x192xf32>
    %c0_1 = arith.constant 0 : index
    %c0_2 = arith.constant 0 : index
    %1 = vector.load %arg2[%c0_1, %c0_2] : memref<192x24xf32, #tpu.memory_space<vmem>>, vector<192x24xf32>
    %cst = arith.constant dense<0.000000e+00> : vector<98x24xf32>
    %2 = tpu.matmul %0, %1, %cst {dimension_numbers = #tpu.dot_dimension_numbers<[1], [0], [0], [1], [0, 0, 1, 1], [], []>} : vector<98x192xf32>, vector<192x24xf32>, vector<98x24xf32> -> vector<98x24xf32>
    %c0_3 = arith.constant 0 : index
    %c0_4 = arith.constant 0 : index
    %3 = vector.load %arg3[%c0_3, %c0_4] : memref<1x24xf32, #tpu.memory_space<vmem>>, vector<1x24xf32>
    %4 = vector.broadcast %3 : vector<1x24xf32> to vector<98x24xf32>
    %5 = arith.addf %2, %4 : vector<98x24xf32>
    %cst_5 = arith.constant 0.000000e+00 : f32
    %6 = vector.broadcast %cst_5 : f32 to vector<98x24xf32>
    %7 = arith.maximumf %5, %6 : vector<98x24xf32>
    %c0_6 = arith.constant 0 : index
    %c0_7 = arith.constant 0 : index
    %8 = vector.load %arg4[%c0_6, %c0_7] : memref<98x24xf32, #tpu.memory_space<vmem>>, vector<98x24xf32>
    tpu.vector_store %arg4[%c0_6, %c0_7], %7 {strides = array<i32>} : memref<98x24xf32, #tpu.memory_space<vmem>>, vector<98x24xf32>,
    return
  }
  func.func @transform_0(%arg0: i32) -> (i32, i32) {
    %c0_i32 = arith.constant 0 : i32
    %c0_i32_0 = arith.constant 0 : i32
    %c0_i32_1 = arith.constant 0 : i32
    return %c0_i32, %c0_i32_0 : i32, i32
  }
  func.func @transform_1(%arg0: i32) -> (i32, i32) {
    %c0_i32 = arith.constant 0 : i32
    %c0_i32_0 = arith.constant 0 : i32
    %c0_i32_1 = arith.constant 0 : i32
    return %c0_i32, %c0_i32_0 : i32, i32
  }
  func.func @transform_2(%arg0: i32) -> (i32, i32) {
    %c0_i32 = arith.constant 0 : i32
    %c0_i32_0 = arith.constant 0 : i32
    %c0_i32_1 = arith.constant 0 : i32
    return %c0_i32, %c0_i32_0 : i32, i32
  }
  func.func @transform_3(%arg0: i32) -> (i32, i32) {
    %c0_i32 = arith.constant 0 : i32
    %c0_i32_0 = arith.constant 0 : i32
    %c0_i32_1 = arith.constant 0 : i32
    return %c0_i32, %c0_i32_0 : i32, i32
  }
}

module attributes {stable_mosaic.version = 11 : i64} {
  func.func @_fc_heads_kernel(%arg0: i32, %arg1: memref<2x1176xf32, #tpu.memory_space<vmem>>, %arg2: memref<2x10xf32, #tpu.memory_space<vmem>>, %arg3: memref<1176x64xf32, #tpu.memory_space<vmem>>, %arg4: memref<10x64xf32, #tpu.memory_space<vmem>>, %arg5: memref<1x64xf32, #tpu.memory_space<vmem>>, %arg6: memref<64x32xf32, #tpu.memory_space<vmem>>, %arg7: memref<1x32xf32, #tpu.memory_space<vmem>>, %arg8: memref<2x32xf32, #tpu.memory_space<vmem>>) attributes {dimension_semantics = [#tpu.dimension_semantics<arbitrary>], iteration_bounds = array<i64: 1>, scalar_prefetch = 0 : i64, scratch_operands = 0 : i64, tpu.core_type = #tpu.core_type<tc>, window_params = [{pipeline_mode = #tpu.pipeline_mode<synchronous>, transform_indices = @transform_0, window_bounds = array<i64: 2, 1176>}, {pipeline_mode = #tpu.pipeline_mode<synchronous>, transform_indices = @transform_1, window_bounds = array<i64: 2, 10>}, {pipeline_mode = #tpu.pipeline_mode<synchronous>, transform_indices = @transform_2, window_bounds = array<i64: 1176, 64>}, {pipeline_mode = #tpu.pipeline_mode<synchronous>, transform_indices = @transform_3, window_bounds = array<i64: 10, 64>}, {pipeline_mode = #tpu.pipeline_mode<synchronous>, transform_indices = @transform_4, window_bounds = array<i64: 1, 64>}, {pipeline_mode = #tpu.pipeline_mode<synchronous>, transform_indices = @transform_5, window_bounds = array<i64: 64, 32>}, {pipeline_mode = #tpu.pipeline_mode<synchronous>, transform_indices = @transform_6, window_bounds = array<i64: 1, 32>}, {pipeline_mode = #tpu.pipeline_mode<synchronous>, transform_indices = @transform_7, window_bounds = array<i64: 2, 32>}]} {
    %c0 = arith.constant 0 : index
    %c0_0 = arith.constant 0 : index
    %0 = vector.load %arg1[%c0, %c0_0] : memref<2x1176xf32, #tpu.memory_space<vmem>>, vector<2x1176xf32>
    %c0_1 = arith.constant 0 : index
    %c0_2 = arith.constant 0 : index
    %1 = vector.load %arg3[%c0_1, %c0_2] : memref<1176x64xf32, #tpu.memory_space<vmem>>, vector<1176x64xf32>
    %cst = arith.constant dense<0.000000e+00> : vector<2x64xf32>
    %2 = tpu.matmul %0, %1, %cst {dimension_numbers = #tpu.dot_dimension_numbers<[1], [0], [0], [1], [0, 0, 1, 1], [], []>} : vector<2x1176xf32>, vector<1176x64xf32>, vector<2x64xf32> -> vector<2x64xf32>
    %c0_3 = arith.constant 0 : index
    %c0_4 = arith.constant 0 : index
    %3 = vector.load %arg2[%c0_3, %c0_4] : memref<2x10xf32, #tpu.memory_space<vmem>>, vector<2x10xf32>
    %c0_5 = arith.constant 0 : index
    %c0_6 = arith.constant 0 : index
    %4 = vector.load %arg4[%c0_5, %c0_6] : memref<10x64xf32, #tpu.memory_space<vmem>>, vector<10x64xf32>
    %cst_7 = arith.constant dense<0.000000e+00> : vector<2x64xf32>
    %5 = tpu.matmul %3, %4, %cst_7 {dimension_numbers = #tpu.dot_dimension_numbers<[1], [0], [0], [1], [0, 0, 1, 1], [], []>} : vector<2x10xf32>, vector<10x64xf32>, vector<2x64xf32> -> vector<2x64xf32>
    %6 = arith.addf %2, %5 : vector<2x64xf32>
    %c0_8 = arith.constant 0 : index
    %c0_9 = arith.constant 0 : index
    %7 = vector.load %arg5[%c0_8, %c0_9] : memref<1x64xf32, #tpu.memory_space<vmem>>, vector<1x64xf32>
    %8 = vector.broadcast %7 : vector<1x64xf32> to vector<2x64xf32>
    %9 = arith.addf %6, %8 : vector<2x64xf32>
    %cst_10 = arith.constant 0.000000e+00 : f32
    %10 = vector.broadcast %cst_10 : f32 to vector<2x64xf32>
    %11 = arith.maximumf %9, %10 : vector<2x64xf32>
    %c0_11 = arith.constant 0 : index
    %c0_12 = arith.constant 0 : index
    %12 = vector.load %arg6[%c0_11, %c0_12] : memref<64x32xf32, #tpu.memory_space<vmem>>, vector<64x32xf32>
    %cst_13 = arith.constant dense<0.000000e+00> : vector<2x32xf32>
    %13 = tpu.matmul %11, %12, %cst_13 {dimension_numbers = #tpu.dot_dimension_numbers<[1], [0], [0], [1], [0, 0, 1, 1], [], []>} : vector<2x64xf32>, vector<64x32xf32>, vector<2x32xf32> -> vector<2x32xf32>
    %c0_14 = arith.constant 0 : index
    %c0_15 = arith.constant 0 : index
    %14 = vector.load %arg7[%c0_14, %c0_15] : memref<1x32xf32, #tpu.memory_space<vmem>>, vector<1x32xf32>
    %15 = vector.broadcast %14 : vector<1x32xf32> to vector<2x32xf32>
    %16 = arith.addf %13, %15 : vector<2x32xf32>
    %c0_16 = arith.constant 0 : index
    %c0_17 = arith.constant 0 : index
    %17 = vector.load %arg8[%c0_16, %c0_17] : memref<2x32xf32, #tpu.memory_space<vmem>>, vector<2x32xf32>
    tpu.vector_store %arg8[%c0_16, %c0_17], %16 {strides = array<i32>} : memref<2x32xf32, #tpu.memory_space<vmem>>, vector<2x32xf32>,
    return
  }
  func.func @transform_0(%arg0: i32) -> (i32, i32) {
    %c0_i32 = arith.constant 0 : i32
    %c0_i32_0 = arith.constant 0 : i32
    %c0_i32_1 = arith.constant 0 : i32
    return %c0_i32, %c0_i32_0 : i32, i32
  }
  func.func @transform_1(%arg0: i32) -> (i32, i32) {
    %c0_i32 = arith.constant 0 : i32
    %c0_i32_0 = arith.constant 0 : i32
    %c0_i32_1 = arith.constant 0 : i32
    return %c0_i32, %c0_i32_0 : i32, i32
  }
  func.func @transform_2(%arg0: i32) -> (i32, i32) {
    %c0_i32 = arith.constant 0 : i32
    %c0_i32_0 = arith.constant 0 : i32
    %c0_i32_1 = arith.constant 0 : i32
    return %c0_i32, %c0_i32_0 : i32, i32
  }
  func.func @transform_3(%arg0: i32) -> (i32, i32) {
    %c0_i32 = arith.constant 0 : i32
    %c0_i32_0 = arith.constant 0 : i32
    %c0_i32_1 = arith.constant 0 : i32
    return %c0_i32, %c0_i32_0 : i32, i32
  }
  func.func @transform_4(%arg0: i32) -> (i32, i32) {
    %c0_i32 = arith.constant 0 : i32
    %c0_i32_0 = arith.constant 0 : i32
    %c0_i32_1 = arith.constant 0 : i32
    return %c0_i32, %c0_i32_0 : i32, i32
  }
  func.func @transform_5(%arg0: i32) -> (i32, i32) {
    %c0_i32 = arith.constant 0 : i32
    %c0_i32_0 = arith.constant 0 : i32
    %c0_i32_1 = arith.constant 0 : i32
    return %c0_i32, %c0_i32_0 : i32, i32
  }
  func.func @transform_6(%arg0: i32) -> (i32, i32) {
    %c0_i32 = arith.constant 0 : i32
    %c0_i32_0 = arith.constant 0 : i32
    %c0_i32_1 = arith.constant 0 : i32
    return %c0_i32, %c0_i32_0 : i32, i32
  }
  func.func @transform_7(%arg0: i32) -> (i32, i32) {
    %c0_i32 = arith.constant 0 : i32
    %c0_i32_0 = arith.constant 0 : i32
    %c0_i32_1 = arith.constant 0 : i32
    return %c0_i32, %c0_i32_0 : i32, i32
  }
}

</mosaic_0001>

<llo_original>
// kernel: encoder_forward.3
$region0: #{encoder_forward.3}
  #allocation0 [shape = 'u32[]', space=smem, size = 0x4, offset = 0x4, fixed_abs, tag = 'smem constant byte address 0x4 - core index']
  #allocation1 [shape = 'u32[72,128]{1,0:T(1,128)}', space=vmem, size = 0x9000, scoped, tag = 'internal scratch']
  %s0 = inlined_call_operand.vmem [shape: f32[392,16], index: 0, kind: input, shape index: {}]
  %s1 = inlined_call_operand.vmem [shape: f32[16,12], index: 1, kind: input, shape index: {}]
  %s2 = inlined_call_operand.vmem [shape: f32[1,12], index: 2, kind: input, shape index: {}]
  %s3 = inlined_call_operand.vmem [shape: f32[392,12], index: 3, kind: output, shape index: {}]
  %s4 = sld [smem:[#allocation0]]
  $region22: #{encoder_forward.3} parent=0
    _
  %s6 = ssub.s32 1, %s4
  %s7 = scalar_select 0, %s6, %s4
  // Predicated region
  $region2: #{encoder_forward.3} parent=0 // pred_check
    _
  $region3: #{encoder_forward.3} parent=0 // pred_check_branch
    %9 = sbr.rel (0) target = $region5
  $region4: #{encoder_forward.3} parent=0 // pred_region
    _
  $region5: #{encoder_forward.3} parent=0 // pred_fallthru
    _
  // Predicated region
  $region6: #{encoder_forward.3} parent=0 // pred_check
    _
  $region7: #{encoder_forward.3} parent=0 // pred_check_branch
    %11 = sbr.rel (0) target = $region9
  $region8: #{encoder_forward.3} parent=0 // pred_region
    _
  $region9: #{encoder_forward.3} parent=0 // pred_fallthru
    _
  // Predicated region
  $region10: #{encoder_forward.3} parent=0 // pred_check
    _
  $region11: #{encoder_forward.3} parent=0 // pred_check_branch
    %13 = sbr.rel (0) target = $region13
  $region12: #{encoder_forward.3} parent=0 // pred_region
    _
  $region13: #{encoder_forward.3} parent=0 // pred_fallthru
    _
  %v14 = vld [vmem:[%s0] sm:$0xff]
  %v15 = vld [vmem:[%s0 + $0x8] sm:$0xff]
  %v16 = vld [vmem:[%s0 + $0x10] sm:$0xff]
  %v17 = vld [vmem:[%s0 + $0x18] sm:$0xff]
  %v18 = vld [vmem:[%s0 + $0x20] sm:$0xff]
  %v19 = vld [vmem:[%s0 + $0x28] sm:$0xff]
  %v20 = vld [vmem:[%s0 + $0x30] sm:$0xff]
  %v21 = vld [vmem:[%s0 + $0x38] sm:$0xff]
  %v22 = vld [vmem:[%s0 + $0x40] sm:$0xff]
  %v23 = vld [vmem:[%s0 + $0x48] sm:$0xff]
  %v24 = vld [vmem:[%s0 + $0x50] sm:$0xff]
  %v25 = vld [vmem:[%s0 + $0x58] sm:$0xff]
  %v26 = vld [vmem:[%s0 + $0x60] sm:$0xff]
  %v27 = vld [vmem:[%s0 + $0x68] sm:$0xff]
  %v28 = vld [vmem:[%s0 + $0x70] sm:$0xff]
  %v29 = vld [vmem:[%s0 + $0x78] sm:$0xff]
  %v30 = vld [vmem:[%s0 + $0x80] sm:$0xff]
  %v31 = vld [vmem:[%s0 + $0x88] sm:$0xff]
  %v32 = vld [vmem:[%s0 + $0x90] sm:$0xff]
  %v33 = vld [vmem:[%s0 + $0x98] sm:$0xff]
  %v34 = vld [vmem:[%s0 + $0xa0] sm:$0xff]
  %v35 = vld [vmem:[%s0 + $0xa8] sm:$0xff]
  %v36 = vld [vmem:[%s0 + $0xb0] sm:$0xff]
  %v37 = vld [vmem:[%s0 + $0xb8] sm:$0xff]
  %v38 = vld [vmem:[%s0 + $0xc0] sm:$0xff]
  %v39 = vld [vmem:[%s0 + $0xc8] sm:$0xff]
  %v40 = vld [vmem:[%s0 + $0xd0] sm:$0xff]
  %v41 = vld [vmem:[%s0 + $0xd8] sm:$0xff]
  %v42 = vld [vmem:[%s0 + $0xe0] sm:$0xff]
  %v43 = vld [vmem:[%s0 + $0xe8] sm:$0xff]
  %v44 = vld [vmem:[%s0 + $0xf0] sm:$0xff]
  %v45 = vld [vmem:[%s0 + $0xf8] sm:$0xff]
  %v46 = vld [vmem:[%s0 + $0x100] sm:$0xff]
  %v47 = vld [vmem:[%s0 + $0x108] sm:$0xff]
  %v48 = vld [vmem:[%s0 + $0x110] sm:$0xff]
  %v49 = vld [vmem:[%s0 + $0x118] sm:$0xff]
  %v50 = vld [vmem:[%s0 + $0x120] sm:$0xff]
  %v51 = vld [vmem:[%s0 + $0x128] sm:$0xff]
  %v52 = vld [vmem:[%s0 + $0x130] sm:$0xff]
  %v53 = vld [vmem:[%s0 + $0x138] sm:$0xff]
  %v54 = vld [vmem:[%s0 + $0x140] sm:$0xff]
  %v55 = vld [vmem:[%s0 + $0x148] sm:$0xff]
  %v56 = vld [vmem:[%s0 + $0x150] sm:$0xff]
  %v57 = vld [vmem:[%s0 + $0x158] sm:$0xff]
  %v58 = vld [vmem:[%s0 + $0x160] sm:$0xff]
  %v59 = vld [vmem:[%s0 + $0x168] sm:$0xff]
  %v60 = vld [vmem:[%s0 + $0x170] sm:$0xff]
  %v61 = vld [vmem:[%s0 + $0x178] sm:$0xff]
  %v62 = vld [vmem:[%s0 + $0x180] sm:$0xff]
  %v63 = vld [vmem:[%s1] sm:$0xff]
  %v64 = vld [vmem:[%s1 + $0x8] sm:$0xff]
  %v65 = vld [vmem:[%s2] sm:$0x1]
  %v67 = vperm.slane %v65, 0
  %vm69 = vcmask 130048
  %v71 = vsel %vm69, %v14, 0
  %v74 = vsel %vm69, %v15, 0
  %v77 = vsel %vm69, %v16, 0
  %v80 = vsel %vm69, %v17, 0
  %v83 = vsel %vm69, %v18, 0
  %v86 = vsel %vm69, %v19, 0
  %v89 = vsel %vm69, %v20, 0
  %v92 = vsel %vm69, %v21, 0
  %v95 = vsel %vm69, %v22, 0
  %v98 = vsel %vm69, %v23, 0
  %v101 = vsel %vm69, %v24, 0
  %v104 = vsel %vm69, %v25, 0
  %v107 = vsel %vm69, %v26, 0
  %v110 = vsel %vm69, %v27, 0
  %v113 = vsel %vm69, %v28, 0
  %v116 = vsel %vm69, %v29, 0
  %v119 = vsel %vm69, %v30, 0
  %v122 = vsel %vm69, %v31, 0
  %v125 = vsel %vm69, %v32, 0
  %v128 = vsel %vm69, %v33, 0
  %v131 = vsel %vm69, %v34, 0
  %v134 = vsel %vm69, %v35, 0
  %v137 = vsel %vm69, %v36, 0
  %v140 = vsel %vm69, %v37, 0
  %v143 = vsel %vm69, %v38, 0
  %v146 = vsel %vm69, %v39, 0
  %v149 = vsel %vm69, %v40, 0
  %v152 = vsel %vm69, %v41, 0
  %v155 = vsel %vm69, %v42, 0
  %v158 = vsel %vm69, %v43, 0
  %v161 = vsel %vm69, %v44, 0
  %v164 = vsel %vm69, %v45, 0
  %v167 = vsel %vm69, %v46, 0
  %v170 = vsel %vm69, %v47, 0
  %v173 = vsel %vm69, %v48, 0
  %v176 = vsel %vm69, %v49, 0
  %v179 = vsel %vm69, %v50, 0
  %v182 = vsel %vm69, %v51, 0
  %v185 = vsel %vm69, %v52, 0
  %v188 = vsel %vm69, %v53, 0
  %v191 = vsel %vm69, %v54, 0
  %v194 = vsel %vm69, %v55, 0
  %v197 = vsel %vm69, %v56, 0
  %v200 = vsel %vm69, %v57, 0
  %v203 = vsel %vm69, %v58, 0
  %v206 = vsel %vm69, %v59, 0
  %v209 = vsel %vm69, %v60, 0
  %v212 = vsel %vm69, %v61, 0
  %v215 = vsel %vm69, %v62, 0
  %217 = vmatpush.msra.mxu0 0.0
  %218 = vmatpush.msra.mxu0 0.0
  %219 = vmatpush.msra.mxu0 0.0
  %220 = vmatpush.msra.mxu0 0.0
  %221 = vmatpush.msra.mxu0 0.0
  %222 = vmatpush.msra.mxu0 0.0
  %223 = vmatpush.msra.mxu0 0.0
  %224 = vmatpush.msra.mxu0 0.0
  %225 = vmatpush.msra.mxu0 0.0
  %226 = vmatpush.msra.mxu0 0.0
  %227 = vmatpush.msra.mxu0 0.0
  %228 = vmatpush.msra.mxu0 0.0
  %229 = vmatpush.msra.mxu0 0.0
  %230 = vmatpush.msra.mxu0 0.0
  %231 = vmatpush.msra.mxu0 %v64
  %232 = vmatpush.msra.mxu0 %v63
  %233 = vmatmul.f32.gmra.mxu0 %v71
  %v234 = vpop.f32.mrf.mxu0
  %v235 = vadd.f32 %v67, %v234
  %236 = vmatmul.f32.gmra.mxu0 %v74
  %v237 = vpop.f32.mrf.mxu0
  %v238 = vadd.f32 %v67, %v237
  %239 = vmatmul.f32.gmra.mxu0 %v77
  %v240 = vpop.f32.mrf.mxu0
  %v241 = vadd.f32 %v67, %v240
  %242 = vmatmul.f32.gmra.mxu0 %v80
  %v243 = vpop.f32.mrf.mxu0
  %v244 = vadd.f32 %v67, %v243
  %245 = vmatmul.f32.gmra.mxu0 %v83
  %v246 = vpop.f32.mrf.mxu0
  %v247 = vadd.f32 %v67, %v246
  %248 = vmatmul.f32.gmra.mxu0 %v86
  %v249 = vpop.f32.mrf.mxu0
  %v250 = vadd.f32 %v67, %v249
  %251 = vmatmul.f32.gmra.mxu0 %v89
  %v252 = vpop.f32.mrf.mxu0
  %v253 = vadd.f32 %v67, %v252
  %254 = vmatmul.f32.gmra.mxu0 %v92
  %v255 = vpop.f32.mrf.mxu0
  %v256 = vadd.f32 %v67, %v255
  %257 = vmatmul.f32.gmra.mxu0 %v95
  %v258 = vpop.f32.mrf.mxu0
  %v259 = vadd.f32 %v67, %v258
  %260 = vmatmul.f32.gmra.mxu0 %v98
  %v261 = vpop.f32.mrf.mxu0
  %v262 = vadd.f32 %v67, %v261
  %263 = vmatmul.f32.gmra.mxu0 %v101
  %v264 = vpop.f32.mrf.mxu0
  %v265 = vadd.f32 %v67, %v264
  %266 = vmatmul.f32.gmra.mxu0 %v104
  %v267 = vpop.f32.mrf.mxu0
  %v268 = vadd.f32 %v67, %v267
  %269 = vmatmul.f32.gmra.mxu0 %v107
  %v270 = vpop.f32.mrf.mxu0
  %v271 = vadd.f32 %v67, %v270
  %272 = vmatmul.f32.gmra.mxu0 %v110
  %v273 = vpop.f32.mrf.mxu0
  %v274 = vadd.f32 %v67, %v273
  %275 = vmatmul.f32.gmra.mxu0 %v113
  %v276 = vpop.f32.mrf.mxu0
  %v277 = vadd.f32 %v67, %v276
  %278 = vmatmul.f32.gmra.mxu0 %v116
  %v279 = vpop.f32.mrf.mxu0
  %v280 = vadd.f32 %v67, %v279
  %281 = vmatmul.f32.gmra.mxu0 %v119
  %v282 = vpop.f32.mrf.mxu0
  %v283 = vadd.f32 %v67, %v282
  %284 = vmatmul.f32.gmra.mxu0 %v122
  %v285 = vpop.f32.mrf.mxu0
  %v286 = vadd.f32 %v67, %v285
  %287 = vmatmul.f32.gmra.mxu0 %v125
  %v288 = vpop.f32.mrf.mxu0
  %v289 = vadd.f32 %v67, %v288
  %290 = vmatmul.f32.gmra.mxu0 %v128
  %v291 = vpop.f32.mrf.mxu0
  %v292 = vadd.f32 %v67, %v291
  %293 = vmatmul.f32.gmra.mxu0 %v131
  %v294 = vpop.f32.mrf.mxu0
  %v295 = vadd.f32 %v67, %v294
  %296 = vmatmul.f32.gmra.mxu0 %v134
  %v297 = vpop.f32.mrf.mxu0
  %v298 = vadd.f32 %v67, %v297
  %299 = vmatmul.f32.gmra.mxu0 %v137
  %v300 = vpop.f32.mrf.mxu0
  %v301 = vadd.f32 %v67, %v300
  %302 = vmatmul.f32.gmra.mxu0 %v140
  %v303 = vpop.f32.mrf.mxu0
  %v304 = vadd.f32 %v67, %v303
  %305 = vmatmul.f32.gmra.mxu0 %v143
  %v306 = vpop.f32.mrf.mxu0
  %v307 = vadd.f32 %v67, %v306
  %308 = vmatmul.f32.gmra.mxu0 %v146
  %v309 = vpop.f32.mrf.mxu0
  %v310 = vadd.f32 %v67, %v309
  %311 = vmatmul.f32.gmra.mxu0 %v149
  %v312 = vpop.f32.mrf.mxu0
  %v313 = vadd.f32 %v67, %v312
  %314 = vmatmul.f32.gmra.mxu0 %v152
  %v315 = vpop.f32.mrf.mxu0
  %v316 = vadd.f32 %v67, %v315
  %317 = vmatmul.f32.gmra.mxu0 %v155
  %v318 = vpop.f32.mrf.mxu0
  %v319 = vadd.f32 %v67, %v318
  %320 = vmatmul.f32.gmra.mxu0 %v158
  %v321 = vpop.f32.mrf.mxu0
  %v322 = vadd.f32 %v67, %v321
  %323 = vmatmul.f32.gmra.mxu0 %v161
  %v324 = vpop.f32.mrf.mxu0
  %v325 = vadd.f32 %v67, %v324
  %326 = vmatmul.f32.gmra.mxu0 %v164
  %v327 = vpop.f32.mrf.mxu0
  %v328 = vadd.f32 %v67, %v327
  %329 = vmatmul.f32.gmra.mxu0 %v167
  %v330 = vpop.f32.mrf.mxu0
  %v331 = vadd.f32 %v67, %v330
  %332 = vmatmul.f32.gmra.mxu0 %v170
  %v333 = vpop.f32.mrf.mxu0
  %v334 = vadd.f32 %v67, %v333
  %335 = vmatmul.f32.gmra.mxu0 %v173
  %v336 = vpop.f32.mrf.mxu0
  %v337 = vadd.f32 %v67, %v336
  %338 = vmatmul.f32.gmra.mxu0 %v176
  %v339 = vpop.f32.mrf.mxu0
  %v340 = vadd.f32 %v67, %v339
  %341 = vmatmul.f32.gmra.mxu0 %v179
  %v342 = vpop.f32.mrf.mxu0
  %v343 = vadd.f32 %v67, %v342
  %344 = vmatmul.f32.gmra.mxu0 %v182
  %v345 = vpop.f32.mrf.mxu0
  %v346 = vadd.f32 %v67, %v345
  %347 = vmatmul.f32.gmra.mxu0 %v185
  %v348 = vpop.f32.mrf.mxu0
  %v349 = vadd.f32 %v67, %v348
  %350 = vmatmul.f32.gmra.mxu0 %v188
  %v351 = vpop.f32.mrf.mxu0
  %v352 = vadd.f32 %v67, %v351
  %353 = vmatmul.f32.gmra.mxu0 %v191
  %v354 = vpop.f32.mrf.mxu0
  %v355 = vadd.f32 %v67, %v354
  %356 = vmatmul.f32.gmra.mxu0 %v194
  %v357 = vpop.f32.mrf.mxu0
  %v358 = vadd.f32 %v67, %v357
  %359 = vmatmul.f32.gmra.mxu0 %v197
  %v360 = vpop.f32.mrf.mxu0
  %v361 = vadd.f32 %v67, %v360
  %362 = vmatmul.f32.gmra.mxu0 %v200
  %v363 = vpop.f32.mrf.mxu0
  %v364 = vadd.f32 %v67, %v363
  %365 = vmatmul.f32.gmra.mxu0 %v203
  %v366 = vpop.f32.mrf.mxu0
  %v367 = vadd.f32 %v67, %v366
  %368 = vmatmul.f32.gmra.mxu0 %v206
  %v369 = vpop.f32.mrf.mxu0
  %v370 = vadd.f32 %v67, %v369
  %371 = vmatmul.f32.gmra.mxu0 %v209
  %v372 = vpop.f32.mrf.mxu0
  %v373 = vadd.f32 %v67, %v372
  %374 = vmatmul.f32.gmra.mxu0 %v212
  %v375 = vpop.f32.mrf.mxu0
  %v376 = vadd.f32 %v67, %v375
  %377 = vmatmul.f32.gmra.mxu0 %v215
  %v378 = vpop.f32.mrf.mxu0
  %v379 = vadd.f32 %v67, %v378
  %380 = vdwg.mxu0
  %v381 = vmax.f32 %v235, 0.0
  %v382 = vmax.f32 %v238, 0.0
  %v383 = vmax.f32 %v241, 0.0
  %v384 = vmax.f32 %v244, 0.0
  %v385 = vmax.f32 %v247, 0.0
  %v386 = vmax.f32 %v250, 0.0
  %v387 = vmax.f32 %v253, 0.0
  %v388 = vmax.f32 %v256, 0.0
  %v389 = vmax.f32 %v259, 0.0
  %v390 = vmax.f32 %v262, 0.0
  %v391 = vmax.f32 %v265, 0.0
  %v392 = vmax.f32 %v268, 0.0
  %v393 = vmax.f32 %v271, 0.0
  %v394 = vmax.f32 %v274, 0.0
  %v395 = vmax.f32 %v277, 0.0
  %v396 = vmax.f32 %v280, 0.0
  %v397 = vmax.f32 %v283, 0.0
  %v398 = vmax.f32 %v286, 0.0
  %v399 = vmax.f32 %v289, 0.0
  %v400 = vmax.f32 %v292, 0.0
  %v401 = vmax.f32 %v295, 0.0
  %v402 = vmax.f32 %v298, 0.0
  %v403 = vmax.f32 %v301, 0.0
  %v404 = vmax.f32 %v304, 0.0
  %v405 = vmax.f32 %v307, 0.0
  %v406 = vmax.f32 %v310, 0.0
  %v407 = vmax.f32 %v313, 0.0
  %v408 = vmax.f32 %v316, 0.0
  %v409 = vmax.f32 %v319, 0.0
  %v410 = vmax.f32 %v322, 0.0
  %v411 = vmax.f32 %v325, 0.0
  %v412 = vmax.f32 %v328, 0.0
  %v413 = vmax.f32 %v331, 0.0
  %v414 = vmax.f32 %v334, 0.0
  %v415 = vmax.f32 %v337, 0.0
  %v416 = vmax.f32 %v340, 0.0
  %v417 = vmax.f32 %v343, 0.0
  %v418 = vmax.f32 %v346, 0.0
  %v419 = vmax.f32 %v349, 0.0
  %v420 = vmax.f32 %v352, 0.0
  %v421 = vmax.f32 %v355, 0.0
  %v422 = vmax.f32 %v358, 0.0
  %v423 = vmax.f32 %v361, 0.0
  %v424 = vmax.f32 %v364, 0.0
  %v425 = vmax.f32 %v367, 0.0
  %v426 = vmax.f32 %v370, 0.0
  %v427 = vmax.f32 %v373, 0.0
  %v428 = vmax.f32 %v376, 0.0
  %v429 = vmax.f32 %v379, 0.0
  %vm430 = vcmask 97280
  %431 = vst.msk [vmem:[%s3] sm:$0xff] %vm430, %v381
  %432 = vst.msk [vmem:[%s3 + $0x8] sm:$0xff] %vm430, %v382
  %433 = vst.msk [vmem:[%s3 + $0x10] sm:$0xff] %vm430, %v383
  %434 = vst.msk [vmem:[%s3 + $0x18] sm:$0xff] %vm430, %v384
  %435 = vst.msk [vmem:[%s3 + $0x20] sm:$0xff] %vm430, %v385
  %436 = vst.msk [vmem:[%s3 + $0x28] sm:$0xff] %vm430, %v386
  %437 = vst.msk [vmem:[%s3 + $0x30] sm:$0xff] %vm430, %v387
  %438 = vst.msk [vmem:[%s3 + $0x38] sm:$0xff] %vm430, %v388
  %439 = vst.msk [vmem:[%s3 + $0x40] sm:$0xff] %vm430, %v389
  %440 = vst.msk [vmem:[%s3 + $0x48] sm:$0xff] %vm430, %v390
  %441 = vst.msk [vmem:[%s3 + $0x50] sm:$0xff] %vm430, %v391
  %442 = vst.msk [vmem:[%s3 + $0x58] sm:$0xff] %vm430, %v392
  %443 = vst.msk [vmem:[%s3 + $0x60] sm:$0xff] %vm430, %v393
  %444 = vst.msk [vmem:[%s3 + $0x68] sm:$0xff] %vm430, %v394
  %445 = vst.msk [vmem:[%s3 + $0x70] sm:$0xff] %vm430, %v395
  %446 = vst.msk [vmem:[%s3 + $0x78] sm:$0xff] %vm430, %v396
  %447 = vst.msk [vmem:[%s3 + $0x80] sm:$0xff] %vm430, %v397
  %448 = vst.msk [vmem:[%s3 + $0x88] sm:$0xff] %vm430, %v398
  %449 = vst.msk [vmem:[%s3 + $0x90] sm:$0xff] %vm430, %v399
  %450 = vst.msk [vmem:[%s3 + $0x98] sm:$0xff] %vm430, %v400
  %451 = vst.msk [vmem:[%s3 + $0xa0] sm:$0xff] %vm430, %v401
  %452 = vst.msk [vmem:[%s3 + $0xa8] sm:$0xff] %vm430, %v402
  %453 = vst.msk [vmem:[%s3 + $0xb0] sm:$0xff] %vm430, %v403
  %454 = vst.msk [vmem:[%s3 + $0xb8] sm:$0xff] %vm430, %v404
  %455 = vst.msk [vmem:[%s3 + $0xc0] sm:$0xff] %vm430, %v405
  %456 = vst.msk [vmem:[%s3 + $0xc8] sm:$0xff] %vm430, %v406
  %457 = vst.msk [vmem:[%s3 + $0xd0] sm:$0xff] %vm430, %v407
  %458 = vst.msk [vmem:[%s3 + $0xd8] sm:$0xff] %vm430, %v408
  %459 = vst.msk [vmem:[%s3 + $0xe0] sm:$0xff] %vm430, %v409
  %460 = vst.msk [vmem:[%s3 + $0xe8] sm:$0xff] %vm430, %v410
  %461 = vst.msk [vmem:[%s3 + $0xf0] sm:$0xff] %vm430, %v411
  %462 = vst.msk [vmem:[%s3 + $0xf8] sm:$0xff] %vm430, %v412
  %463 = vst.msk [vmem:[%s3 + $0x100] sm:$0xff] %vm430, %v413
  %464 = vst.msk [vmem:[%s3 + $0x108] sm:$0xff] %vm430, %v414
  %465 = vst.msk [vmem:[%s3 + $0x110] sm:$0xff] %vm430, %v415
  %466 = vst.msk [vmem:[%s3 + $0x118] sm:$0xff] %vm430, %v416
  %467 = vst.msk [vmem:[%s3 + $0x120] sm:$0xff] %vm430, %v417
  %468 = vst.msk [vmem:[%s3 + $0x128] sm:$0xff] %vm430, %v418
  %469 = vst.msk [vmem:[%s3 + $0x130] sm:$0xff] %vm430, %v419
  %470 = vst.msk [vmem:[%s3 + $0x138] sm:$0xff] %vm430, %v420
  %471 = vst.msk [vmem:[%s3 + $0x140] sm:$0xff] %vm430, %v421
  %472 = vst.msk [vmem:[%s3 + $0x148] sm:$0xff] %vm430, %v422
  %473 = vst.msk [vmem:[%s3 + $0x150] sm:$0xff] %vm430, %v423
  %474 = vst.msk [vmem:[%s3 + $0x158] sm:$0xff] %vm430, %v424
  %475 = vst.msk [vmem:[%s3 + $0x160] sm:$0xff] %vm430, %v425
  %476 = vst.msk [vmem:[%s3 + $0x168] sm:$0xff] %vm430, %v426
  %477 = vst.msk [vmem:[%s3 + $0x170] sm:$0xff] %vm430, %v427
  %478 = vst.msk [vmem:[%s3 + $0x178] sm:$0xff] %vm430, %v428
  %479 = vst.msk [vmem:[%s3 + $0x180] sm:$0xff] %vm430, %v429
  // Predicated region
  $region14: #{encoder_forward.3} parent=0 // pred_check
    _
  $region15: #{encoder_forward.3} parent=0 // pred_check_branch
    %481 = sbr.rel (0) target = $region17
  $region16: #{encoder_forward.3} parent=0 // pred_region
    _
  $region17: #{encoder_forward.3} parent=0 // pred_fallthru
    _
  // Predicated region
  $region18: #{encoder_forward.3} parent=0 // pred_check
    _
  $region19: #{encoder_forward.3} parent=0 // pred_check_branch
    %483 = sbr.rel (0) target = $region21
  $region20: #{encoder_forward.3} parent=0 // pred_region
    _
  $region21: #{encoder_forward.3} parent=0 // pred_fallthru
    _

// kernel: encoder_forward.4
$region0: #{encoder_forward.4}
  #allocation0 [shape = 'u32[]', space=smem, size = 0x4, offset = 0x4, fixed_abs, tag = 'smem constant byte address 0x4 - core index']
  #allocation1 [shape = 'u32[72,128]{1,0:T(1,128)}', space=vmem, size = 0x9000, scoped, tag = 'internal scratch']
  %s0 = inlined_call_operand.vmem [shape: f32[98,192], index: 0, kind: input, shape index: {}]
  %s1 = inlined_call_operand.vmem [shape: f32[192,24], index: 1, kind: input, shape index: {}]
  %s2 = inlined_call_operand.vmem [shape: f32[1,24], index: 2, kind: input, shape index: {}]
  %s3 = inlined_call_operand.vmem [shape: f32[98,24], index: 3, kind: output, shape index: {}]
  %s4 = sld [smem:[#allocation0]]
  $region22: #{encoder_forward.4} parent=0
    _
  %s6 = ssub.s32 1, %s4
  %s7 = scalar_select 0, %s6, %s4
  // Predicated region
  $region2: #{encoder_forward.4} parent=0 // pred_check
    _
  $region3: #{encoder_forward.4} parent=0 // pred_check_branch
    %9 = sbr.rel (0) target = $region5
  $region4: #{encoder_forward.4} parent=0 // pred_region
    _
  $region5: #{encoder_forward.4} parent=0 // pred_fallthru
    _
  // Predicated region
  $region6: #{encoder_forward.4} parent=0 // pred_check
    _
  $region7: #{encoder_forward.4} parent=0 // pred_check_branch
    %11 = sbr.rel (0) target = $region9
  $region8: #{encoder_forward.4} parent=0 // pred_region
    _
  $region9: #{encoder_forward.4} parent=0 // pred_fallthru
    _
  // Predicated region
  $region10: #{encoder_forward.4} parent=0 // pred_check
    _
  $region11: #{encoder_forward.4} parent=0 // pred_check_branch
    %13 = sbr.rel (0) target = $region13
  $region12: #{encoder_forward.4} parent=0 // pred_region
    _
  $region13: #{encoder_forward.4} parent=0 // pred_fallthru
    _
  %v14 = vld [vmem:[%s0] sm:$0xff]
  %v15 = vld [vmem:[%s0 + $0x8] sm:$0xff]
  %v16 = vld [vmem:[%s0 + $0x10] sm:$0xff]
  %v17 = vld [vmem:[%s0 + $0x18] sm:$0xff]
  %v18 = vld [vmem:[%s0 + $0x20] sm:$0xff]
  %v19 = vld [vmem:[%s0 + $0x28] sm:$0xff]
  %v20 = vld [vmem:[%s0 + $0x30] sm:$0xff]
  %v21 = vld [vmem:[%s0 + $0x38] sm:$0xff]
  %v22 = vld [vmem:[%s0 + $0x40] sm:$0xff]
  %v23 = vld [vmem:[%s0 + $0x48] sm:$0xff]
  %v24 = vld [vmem:[%s0 + $0x50] sm:$0xff]
  %v25 = vld [vmem:[%s0 + $0x58] sm:$0xff]
  %v26 = vld [vmem:[%s0 + $0x60] sm:$0xff]
  %v27 = vld [vmem:[%s0 + $0x68] sm:$0xff]
  %v28 = vld [vmem:[%s0 + $0x70] sm:$0xff]
  %v29 = vld [vmem:[%s0 + $0x78] sm:$0xff]
  %v30 = vld [vmem:[%s0 + $0x80] sm:$0xff]
  %v31 = vld [vmem:[%s0 + $0x88] sm:$0xff]
  %v32 = vld [vmem:[%s0 + $0x90] sm:$0xff]
  %v33 = vld [vmem:[%s0 + $0x98] sm:$0xff]
  %v34 = vld [vmem:[%s0 + $0xa0] sm:$0xff]
  %v35 = vld [vmem:[%s0 + $0xa8] sm:$0xff]
  %v36 = vld [vmem:[%s0 + $0xb0] sm:$0xff]
  %v37 = vld [vmem:[%s0 + $0xb8] sm:$0xff]
  %v38 = vld [vmem:[%s0 + $0xc0] sm:$0x3]
  %v39 = vld [vmem:[%s0 + $0xc8] sm:$0x3]
  %v40 = vld [vmem:[%s1] sm:$0xff]
  %v41 = vld [vmem:[%s1 + $0x8] sm:$0xff]
  %v42 = vld [vmem:[%s1 + $0x10] sm:$0xff]
  %v43 = vld [vmem:[%s1 + $0x18] sm:$0xff]
  %v44 = vld [vmem:[%s1 + $0x20] sm:$0xff]
  %v45 = vld [vmem:[%s1 + $0x28] sm:$0xff]
  %v46 = vld [vmem:[%s1 + $0x30] sm:$0xff]
  %v47 = vld [vmem:[%s1 + $0x38] sm:$0xff]
  %v48 = vld [vmem:[%s1 + $0x40] sm:$0xff]
  %v49 = vld [vmem:[%s1 + $0x48] sm:$0xff]
  %v50 = vld [vmem:[%s1 + $0x50] sm:$0xff]
  %v51 = vld [vmem:[%s1 + $0x58] sm:$0xff]
  %v52 = vld [vmem:[%s1 + $0x60] sm:$0xff]
  %v53 = vld [vmem:[%s1 + $0x68] sm:$0xff]
  %v54 = vld [vmem:[%s1 + $0x70] sm:$0xff]
  %v55 = vld [vmem:[%s1 + $0x78] sm:$0xff]
  %v56 = vld [vmem:[%s1 + $0x80] sm:$0xff]
  %v57 = vld [vmem:[%s1 + $0x88] sm:$0xff]
  %v58 = vld [vmem:[%s1 + $0x90] sm:$0xff]
  %v59 = vld [vmem:[%s1 + $0x98] sm:$0xff]
  %v60 = vld [vmem:[%s1 + $0xa0] sm:$0xff]
  %v61 = vld [vmem:[%s1 + $0xa8] sm:$0xff]
  %v62 = vld [vmem:[%s1 + $0xb0] sm:$0xff]
  %v63 = vld [vmem:[%s1 + $0xb8] sm:$0xff]
  %v64 = vld [vmem:[%s2] sm:$0x1]
  %v66 = vperm.slane %v64, 0
  %vm68 = vcmask 523264
  %v70 = vsel %vm68, %v15, 0
  %v73 = vsel %vm68, %v17, 0
  %v76 = vsel %vm68, %v19, 0
  %v79 = vsel %vm68, %v21, 0
  %v82 = vsel %vm68, %v23, 0
  %v85 = vsel %vm68, %v25, 0
  %v88 = vsel %vm68, %v27, 0
  %v91 = vsel %vm68, %v29, 0
  %v94 = vsel %vm68, %v31, 0
  %v97 = vsel %vm68, %v33, 0
  %v100 = vsel %vm68, %v35, 0
  %v103 = vsel %vm68, %v37, 0
  %v106 = vsel %vm68, %v39, 0
  %108 = vmatpush.msra.mxu0 %v55
  %109 = vmatpush.msra.mxu0 %v54
  %110 = vmatpush.msra.mxu0 %v53
  %111 = vmatpush.msra.mxu0 %v52
  %112 = vmatpush.msra.mxu0 %v51
  %113 = vmatpush.msra.mxu0 %v50
  %114 = vmatpush.msra.mxu0 %v49
  %115 = vmatpush.msra.mxu0 %v48
  %116 = vmatpush.msra.mxu0 %v47
  %117 = vmatpush.msra.mxu0 %v46
  %118 = vmatpush.msra.mxu0 %v45
  %119 = vmatpush.msra.mxu0 %v44
  %120 = vmatpush.msra.mxu0 %v43
  %121 = vmatpush.msra.mxu0 %v42
  %122 = vmatpush.msra.mxu0 %v41
  %123 = vmatpush.msra.mxu0 %v40
  %124 = vmatmul.f32.gmra.mxu0 %v14
  %v125 = vpop.f32.mrf.mxu0
  %v126 = vadd.f32 %v66, %v125
  %127 = vmatmul.f32.gmra.mxu0 %v16
  %v128 = vpop.f32.mrf.mxu0
  %v129 = vadd.f32 %v66, %v128
  %130 = vmatmul.f32.gmra.mxu0 %v18
  %v131 = vpop.f32.mrf.mxu0
  %v132 = vadd.f32 %v66, %v131
  %133 = vmatmul.f32.gmra.mxu0 %v20
  %v134 = vpop.f32.mrf.mxu0
  %v135 = vadd.f32 %v66, %v134
  %136 = vmatmul.f32.gmra.mxu0 %v22
  %v137 = vpop.f32.mrf.mxu0
  %v138 = vadd.f32 %v66, %v137
  %139 = vmatmul.f32.gmra.mxu0 %v24
  %v140 = vpop.f32.mrf.mxu0
  %v141 = vadd.f32 %v66, %v140
  %142 = vmatmul.f32.gmra.mxu0 %v26
  %v143 = vpop.f32.mrf.mxu0
  %v144 = vadd.f32 %v66, %v143
  %145 = vmatmul.f32.gmra.mxu0 %v28
  %v146 = vpop.f32.mrf.mxu0
  %v147 = vadd.f32 %v66, %v146
  %148 = vmatmul.f32.gmra.mxu0 %v30
  %v149 = vpop.f32.mrf.mxu0
  %v150 = vadd.f32 %v66, %v149
  %151 = vmatmul.f32.gmra.mxu0 %v32
  %v152 = vpop.f32.mrf.mxu0
  %v153 = vadd.f32 %v66, %v152
  %154 = vmatmul.f32.gmra.mxu0 %v34
  %v155 = vpop.f32.mrf.mxu0
  %v156 = vadd.f32 %v66, %v155
  %157 = vmatmul.f32.gmra.mxu0 %v36
  %v158 = vpop.f32.mrf.mxu0
  %v159 = vadd.f32 %v66, %v158
  %160 = vmatmul.f32.gmra.mxu0 %v38
  %v161 = vpop.f32.mrf.mxu0
  %v162 = vadd.f32 %v66, %v161
  %163 = vdwg.mxu0
  %164 = vmatpush.msra.mxu0 0.0
  %165 = vmatpush.msra.mxu0 0.0
  %166 = vmatpush.msra.mxu0 0.0
  %167 = vmatpush.msra.mxu0 0.0
  %168 = vmatpush.msra.mxu0 0.0
  %169 = vmatpush.msra.mxu0 0.0
  %170 = vmatpush.msra.mxu0 0.0
  %171 = vmatpush.msra.mxu0 0.0
  %172 = vmatpush.msra.mxu0 %v63
  %173 = vmatpush.msra.mxu0 %v62
  %174 = vmatpush.msra.mxu0 %v61
  %175 = vmatpush.msra.mxu0 %v60
  %176 = vmatpush.msra.mxu0 %v59
  %177 = vmatpush.msra.mxu0 %v58
  %178 = vmatpush.msra.mxu0 %v57
  %179 = vmatpush.msra.mxu0 %v56
  %180 = vmatmul.f32.gmra.mxu0 %v70
  %v181 = vpop.f32.mrf.mxu0
  %v182 = vadd.f32 %v126, %v181
  %183 = vmatmul.f32.gmra.mxu0 %v73
  %v184 = vpop.f32.mrf.mxu0
  %v185 = vadd.f32 %v129, %v184
  %186 = vmatmul.f32.gmra.mxu0 %v76
  %v187 = vpop.f32.mrf.mxu0
  %v188 = vadd.f32 %v132, %v187
  %189 = vmatmul.f32.gmra.mxu0 %v79
  %v190 = vpop.f32.mrf.mxu0
  %v191 = vadd.f32 %v135, %v190
  %192 = vmatmul.f32.gmra.mxu0 %v82
  %v193 = vpop.f32.mrf.mxu0
  %v194 = vadd.f32 %v138, %v193
  %195 = vmatmul.f32.gmra.mxu0 %v85
  %v196 = vpop.f32.mrf.mxu0
  %v197 = vadd.f32 %v141, %v196
  %198 = vmatmul.f32.gmra.mxu0 %v88
  %v199 = vpop.f32.mrf.mxu0
  %v200 = vadd.f32 %v144, %v199
  %201 = vmatmul.f32.gmra.mxu0 %v91
  %v202 = vpop.f32.mrf.mxu0
  %v203 = vadd.f32 %v147, %v202
  %204 = vmatmul.f32.gmra.mxu0 %v94
  %v205 = vpop.f32.mrf.mxu0
  %v206 = vadd.f32 %v150, %v205
  %207 = vmatmul.f32.gmra.mxu0 %v97
  %v208 = vpop.f32.mrf.mxu0
  %v209 = vadd.f32 %v153, %v208
  %210 = vmatmul.f32.gmra.mxu0 %v100
  %v211 = vpop.f32.mrf.mxu0
  %v212 = vadd.f32 %v156, %v211
  %213 = vmatmul.f32.gmra.mxu0 %v103
  %v214 = vpop.f32.mrf.mxu0
  %v215 = vadd.f32 %v159, %v214
  %216 = vmatmul.f32.gmra.mxu0 %v106
  %v217 = vpop.f32.mrf.mxu0
  %v218 = vadd.f32 %v162, %v217
  %219 = vdwg.mxu0
  %v220 = vmax.f32 %v182, 0.0
  %v221 = vmax.f32 %v185, 0.0
  %v222 = vmax.f32 %v188, 0.0
  %v223 = vmax.f32 %v191, 0.0
  %v224 = vmax.f32 %v194, 0.0
  %v225 = vmax.f32 %v197, 0.0
  %v226 = vmax.f32 %v200, 0.0
  %v227 = vmax.f32 %v203, 0.0
  %v228 = vmax.f32 %v206, 0.0
  %v229 = vmax.f32 %v209, 0.0
  %v230 = vmax.f32 %v212, 0.0
  %v231 = vmax.f32 %v215, 0.0
  %v232 = vmax.f32 %v218, 0.0
  %vm233 = vcmask 195584
  %234 = vst.msk [vmem:[%s3] sm:$0xff] %vm233, %v220
  %235 = vst.msk [vmem:[%s3 + $0x8] sm:$0xff] %vm233, %v221
  %236 = vst.msk [vmem:[%s3 + $0x10] sm:$0xff] %vm233, %v222
  %237 = vst.msk [vmem:[%s3 + $0x18] sm:$0xff] %vm233, %v223
  %238 = vst.msk [vmem:[%s3 + $0x20] sm:$0xff] %vm233, %v224
  %239 = vst.msk [vmem:[%s3 + $0x28] sm:$0xff] %vm233, %v225
  %240 = vst.msk [vmem:[%s3 + $0x30] sm:$0xff] %vm233, %v226
  %241 = vst.msk [vmem:[%s3 + $0x38] sm:$0xff] %vm233, %v227
  %242 = vst.msk [vmem:[%s3 + $0x40] sm:$0xff] %vm233, %v228
  %243 = vst.msk [vmem:[%s3 + $0x48] sm:$0xff] %vm233, %v229
  %244 = vst.msk [vmem:[%s3 + $0x50] sm:$0xff] %vm233, %v230
  %245 = vst.msk [vmem:[%s3 + $0x58] sm:$0xff] %vm233, %v231
  %vm246 = vcmask 189440
  %247 = vst.msk [vmem:[%s3 + $0x60] sm:$0x3] %vm246, %v232
  // Predicated region
  $region14: #{encoder_forward.4} parent=0 // pred_check
    _
  $region15: #{encoder_forward.4} parent=0 // pred_check_branch
    %249 = sbr.rel (0) target = $region17
  $region16: #{encoder_forward.4} parent=0 // pred_region
    _
  $region17: #{encoder_forward.4} parent=0 // pred_fallthru
    _
  // Predicated region
  $region18: #{encoder_forward.4} parent=0 // pred_check
    _
  $region19: #{encoder_forward.4} parent=0 // pred_check_branch
    %251 = sbr.rel (0) target = $region21
  $region20: #{encoder_forward.4} parent=0 // pred_region
    _
  $region21: #{encoder_forward.4} parent=0 // pred_fallthru
    _

// kernel: encoder_forward.5
$region0: #{encoder_forward.5}
  #allocation0 [shape = 'u32[]', space=smem, size = 0x4, offset = 0x4, fixed_abs, tag = 'smem constant byte address 0x4 - core index']
  #allocation1 [shape = 'u32[72,128]{1,0:T(1,128)}', space=vmem, size = 0x9000, scoped, tag = 'internal scratch']
  %s0 = inlined_call_operand.vmem [shape: f32[2,1176], index: 0, kind: input, shape index: {}]
  %s1 = inlined_call_operand.vmem [shape: f32[2,10], index: 1, kind: input, shape index: {}]
  %s2 = inlined_call_operand.vmem [shape: f32[1176,64], index: 2, kind: input, shape index: {}]
  %s3 = inlined_call_operand.vmem [shape: f32[10,64], index: 3, kind: input, shape index: {}]
  %s4 = inlined_call_operand.vmem [shape: f32[1,64], index: 4, kind: input, shape index: {}]
  %s5 = inlined_call_operand.vmem [shape: f32[64,32], index: 5, kind: input, shape index: {}]
  %s6 = inlined_call_operand.vmem [shape: f32[1,32], index: 6, kind: input, shape index: {}]
  %s7 = inlined_call_operand.vmem [shape: f32[2,32], index: 7, kind: output, shape index: {}]
  %s8 = sld [smem:[#allocation0]]
  $region38: #{encoder_forward.5} parent=0
    _
  %s10 = ssub.s32 1, %s8
  %s11 = scalar_select 0, %s10, %s8
  // Predicated region
  $region2: #{encoder_forward.5} parent=0 // pred_check
    _
  $region3: #{encoder_forward.5} parent=0 // pred_check_branch
    %13 = sbr.rel (0) target = $region5
  $region4: #{encoder_forward.5} parent=0 // pred_region
    _
  $region5: #{encoder_forward.5} parent=0 // pred_fallthru
    _
  // Predicated region
  $region6: #{encoder_forward.5} parent=0 // pred_check
    _
  $region7: #{encoder_forward.5} parent=0 // pred_check_branch
    %15 = sbr.rel (0) target = $region9
  $region8: #{encoder_forward.5} parent=0 // pred_region
    _
  $region9: #{encoder_forward.5} parent=0 // pred_fallthru
    _
  // Predicated region
  $region10: #{encoder_forward.5} parent=0 // pred_check
    _
  $region11: #{encoder_forward.5} parent=0 // pred_check_branch
    %17 = sbr.rel (0) target = $region13
  $region12: #{encoder_forward.5} parent=0 // pred_region
    _
  $region13: #{encoder_forward.5} parent=0 // pred_fallthru
    _
  // Predicated region
  $region14: #{encoder_forward.5} parent=0 // pred_check
    _
  $region15: #{encoder_forward.5} parent=0 // pred_check_branch
    %19 = sbr.rel (0) target = $region17
  $region16: #{encoder_forward.5} parent=0 // pred_region
    _
  $region17: #{encoder_forward.5} parent=0 // pred_fallthru
    _
  // Predicated region
  $region18: #{encoder_forward.5} parent=0 // pred_check
    _
  $region19: #{encoder_forward.5} parent=0 // pred_check_branch
    %21 = sbr.rel (0) target = $region21
  $region20: #{encoder_forward.5} parent=0 // pred_region
    _
  $region21: #{encoder_forward.5} parent=0 // pred_fallthru
    _
  // Predicated region
  $region22: #{encoder_forward.5} parent=0 // pred_check
    _
  $region23: #{encoder_forward.5} parent=0 // pred_check_branch
    %23 = sbr.rel (0) target = $region25
  $region24: #{encoder_forward.5} parent=0 // pred_region
    _
  $region25: #{encoder_forward.5} parent=0 // pred_fallthru
    _
  // Predicated region
  $region26: #{encoder_forward.5} parent=0 // pred_check
    _
  $region27: #{encoder_forward.5} parent=0 // pred_check_branch
    %25 = sbr.rel (0) target = $region29
  $region28: #{encoder_forward.5} parent=0 // pred_region
    _
  $region29: #{encoder_forward.5} parent=0 // pred_fallthru
    _
  %v26 = vld [vmem:[%s0] sm:$0xff]
  %v27 = vld [vmem:[%s0 + $0x8] sm:$0xff]
  %v28 = vld [vmem:[%s0 + $0x10] sm:$0xf]
  %v29 = vld [vmem:[%s2] sm:$0xff]
  %v30 = vld [vmem:[%s2 + $0x8] sm:$0xff]
  %v31 = vld [vmem:[%s2 + $0x10] sm:$0xff]
  %v32 = vld [vmem:[%s2 + $0x18] sm:$0xff]
  %v33 = vld [vmem:[%s2 + $0x20] sm:$0xff]
  %v34 = vld [vmem:[%s2 + $0x28] sm:$0xff]
  %v35 = vld [vmem:[%s2 + $0x30] sm:$0xff]
  %v36 = vld [vmem:[%s2 + $0x38] sm:$0xff]
  %v37 = vld [vmem:[%s2 + $0x40] sm:$0xff]
  %v38 = vld [vmem:[%s2 + $0x48] sm:$0xff]
  %v39 = vld [vmem:[%s2 + $0x50] sm:$0xff]
  %v40 = vld [vmem:[%s2 + $0x58] sm:$0xff]
  %v41 = vld [vmem:[%s2 + $0x60] sm:$0xff]
  %v42 = vld [vmem:[%s2 + $0x68] sm:$0xff]
  %v43 = vld [vmem:[%s2 + $0x70] sm:$0xff]
  %v44 = vld [vmem:[%s2 + $0x78] sm:$0xff]
  %v45 = vld [vmem:[%s2 + $0x80] sm:$0xff]
  %v46 = vld [vmem:[%s2 + $0x88] sm:$0xff]
  %v47 = vld [vmem:[%s2 + $0x90] sm:$0xff]
  %v48 = vld [vmem:[%s2 + $0x98] sm:$0xff]
  %v49 = vld [vmem:[%s2 + $0xa0] sm:$0xff]
  %v50 = vld [vmem:[%s2 + $0xa8] sm:$0xff]
  %v51 = vld [vmem:[%s2 + $0xb0] sm:$0xff]
  %v52 = vld [vmem:[%s2 + $0xb8] sm:$0xff]
  %v53 = vld [vmem:[%s2 + $0xc0] sm:$0xff]
  %v54 = vld [vmem:[%s2 + $0xc8] sm:$0xff]
  %v55 = vld [vmem:[%s2 + $0xd0] sm:$0xff]
  %v56 = vld [vmem:[%s2 + $0xd8] sm:$0xff]
  %v57 = vld [vmem:[%s2 + $0xe0] sm:$0xff]
  %v58 = vld [vmem:[%s2 + $0xe8] sm:$0xff]
  %v59 = vld [vmem:[%s2 + $0xf0] sm:$0xff]
  %v60 = vld [vmem:[%s2 + $0xf8] sm:$0xff]
  %v61 = vld [vmem:[%s2 + $0x100] sm:$0xff]
  %v62 = vld [vmem:[%s2 + $0x108] sm:$0xff]
  %v63 = vld [vmem:[%s2 + $0x110] sm:$0xff]
  %v64 = vld [vmem:[%s2 + $0x118] sm:$0xff]
  %v65 = vld [vmem:[%s2 + $0x120] sm:$0xff]
  %v66 = vld [vmem:[%s2 + $0x128] sm:$0xff]
  %v67 = vld [vmem:[%s2 + $0x130] sm:$0xff]
  %v68 = vld [vmem:[%s2 + $0x138] sm:$0xff]
  %v69 = vld [vmem:[%s2 + $0x140] sm:$0xff]
  %v70 = vld [vmem:[%s2 + $0x148] sm:$0xff]
  %v71 = vld [vmem:[%s2 + $0x150] sm:$0xff]
  %v72 = vld [vmem:[%s2 + $0x158] sm:$0xff]
  %v73 = vld [vmem:[%s2 + $0x160] sm:$0xff]
  %v74 = vld [vmem:[%s2 + $0x168] sm:$0xff]
  %v75 = vld [vmem:[%s2 + $0x170] sm:$0xff]
  %v76 = vld [vmem:[%s2 + $0x178] sm:$0xff]
  %v77 = vld [vmem:[%s2 + $0x180] sm:$0xff]
  %v78 = vld [vmem:[%s2 + $0x188] sm:$0xff]
  %v79 = vld [vmem:[%s2 + $0x190] sm:$0xff]
  %v80 = vld [vmem:[%s2 + $0x198] sm:$0xff]
  %v81 = vld [vmem:[%s2 + $0x1a0] sm:$0xff]
  %v82 = vld [vmem:[%s2 + $0x1a8] sm:$0xff]
  %v83 = vld [vmem:[%s2 + $0x1b0] sm:$0xff]
  %v84 = vld [vmem:[%s2 + $0x1b8] sm:$0xff]
  %v85 = vld [vmem:[%s2 + $0x1c0] sm:$0xff]
  %v86 = vld [vmem:[%s2 + $0x1c8] sm:$0xff]
  %v87 = vld [vmem:[%s2 + $0x1d0] sm:$0xff]
  %v88 = vld [vmem:[%s2 + $0x1d8] sm:$0xff]
  %v89 = vld [vmem:[%s2 + $0x1e0] sm:$0xff]
  %v90 = vld [vmem:[%s2 + $0x1e8] sm:$0xff]
  %v91 = vld [vmem:[%s2 + $0x1f0] sm:$0xff]
  %v92 = vld [vmem:[%s2 + $0x1f8] sm:$0xff]
  %v93 = vld [vmem:[%s2 + $0x200] sm:$0xff]
  %v94 = vld [vmem:[%s2 + $0x208] sm:$0xff]
  %v95 = vld [vmem:[%s2 + $0x210] sm:$0xff]
  %v96 = vld [vmem:[%s2 + $0x218] sm:$0xff]
  %v97 = vld [vmem:[%s2 + $0x220] sm:$0xff]
  %v98 = vld [vmem:[%s2 + $0x228] sm:$0xff]
  %v99 = vld [vmem:[%s2 + $0x230] sm:$0xff]
  %v100 = vld [vmem:[%s2 + $0x238] sm:$0xff]
  %v101 = vld [vmem:[%s2 + $0x240] sm:$0xff]
  %v102 = vld [vmem:[%s2 + $0x248] sm:$0xff]
  %v103 = vld [vmem:[%s2 + $0x250] sm:$0xff]
  %v104 = vld [vmem:[%s2 + $0x258] sm:$0xff]
  %v105 = vld [vmem:[%s2 + $0x260] sm:$0xff]
  %v106 = vld [vmem:[%s2 + $0x268] sm:$0xff]
  %v107 = vld [vmem:[%s2 + $0x270] sm:$0xff]
  %v108 = vld [vmem:[%s2 + $0x278] sm:$0xff]
  %v109 = vld [vmem:[%s2 + $0x280] sm:$0xff]
  %v110 = vld [vmem:[%s2 + $0x288] sm:$0xff]
  %v111 = vld [vmem:[%s2 + $0x290] sm:$0xff]
  %v112 = vld [vmem:[%s2 + $0x298] sm:$0xff]
  %v113 = vld [vmem:[%s2 + $0x2a0] sm:$0xff]
  %v114 = vld [vmem:[%s2 + $0x2a8] sm:$0xff]
  %v115 = vld [vmem:[%s2 + $0x2b0] sm:$0xff]
  %v116 = vld [vmem:[%s2 + $0x2b8] sm:$0xff]
  %v117 = vld [vmem:[%s2 + $0x2c0] sm:$0xff]
  %v118 = vld [vmem:[%s2 + $0x2c8] sm:$0xff]
  %v119 = vld [vmem:[%s2 + $0x2d0] sm:$0xff]
  %v120 = vld [vmem:[%s2 + $0x2d8] sm:$0xff]
  %v121 = vld [vmem:[%s2 + $0x2e0] sm:$0xff]
  %v122 = vld [vmem:[%s2 + $0x2e8] sm:$0xff]
  %v123 = vld [vmem:[%s2 + $0x2f0] sm:$0xff]
  %v124 = vld [vmem:[%s2 + $0x2f8] sm:$0xff]
  %v125 = vld [vmem:[%s2 + $0x300] sm:$0xff]
  %v126 = vld [vmem:[%s2 + $0x308] sm:$0xff]
  %v127 = vld [vmem:[%s2 + $0x310] sm:$0xff]
  %v128 = vld [vmem:[%s2 + $0x318] sm:$0xff]
  %v129 = vld [vmem:[%s2 + $0x320] sm:$0xff]
  %v130 = vld [vmem:[%s2 + $0x328] sm:$0xff]
  %v131 = vld [vmem:[%s2 + $0x330] sm:$0xff]
  %v132 = vld [vmem:[%s2 + $0x338] sm:$0xff]
  %v133 = vld [vmem:[%s2 + $0x340] sm:$0xff]
  %v134 = vld [vmem:[%s2 + $0x348] sm:$0xff]
  %v135 = vld [vmem:[%s2 + $0x350] sm:$0xff]
  %v136 = vld [vmem:[%s2 + $0x358] sm:$0xff]
  %v137 = vld [vmem:[%s2 + $0x360] sm:$0xff]
  %v138 = vld [vmem:[%s2 + $0x368] sm:$0xff]
  %v139 = vld [vmem:[%s2 + $0x370] sm:$0xff]
  %v140 = vld [vmem:[%s2 + $0x378] sm:$0xff]
  %v141 = vld [vmem:[%s2 + $0x380] sm:$0xff]
  %v142 = vld [vmem:[%s2 + $0x388] sm:$0xff]
  %v143 = vld [vmem:[%s2 + $0x390] sm:$0xff]
  %v144 = vld [vmem:[%s2 + $0x398] sm:$0xff]
  %v145 = vld [vmem:[%s2 + $0x3a0] sm:$0xff]
  %v146 = vld [vmem:[%s2 + $0x3a8] sm:$0xff]
  %v147 = vld [vmem:[%s2 + $0x3b0] sm:$0xff]
  %v148 = vld [vmem:[%s2 + $0x3b8] sm:$0xff]
  %v149 = vld [vmem:[%s2 + $0x3c0] sm:$0xff]
  %v150 = vld [vmem:[%s2 + $0x3c8] sm:$0xff]
  %v151 = vld [vmem:[%s2 + $0x3d0] sm:$0xff]
  %v152 = vld [vmem:[%s2 + $0x3d8] sm:$0xff]
  %v153 = vld [vmem:[%s2 + $0x3e0] sm:$0xff]
  %v154 = vld [vmem:[%s2 + $0x3e8] sm:$0xff]
  %v155 = vld [vmem:[%s2 + $0x3f0] sm:$0xff]
  %v156 = vld [vmem:[%s2 + $0x3f8] sm:$0xff]
  %v157 = vld [vmem:[%s2 + $0x400] sm:$0xff]
  %v158 = vld [vmem:[%s2 + $0x408] sm:$0xff]
  %v159 = vld [vmem:[%s2 + $0x410] sm:$0xff]
  %v160 = vld [vmem:[%s2 + $0x418] sm:$0xff]
  %v161 = vld [vmem:[%s2 + $0x420] sm:$0xff]
  %v162 = vld [vmem:[%s2 + $0x428] sm:$0xff]
  %v163 = vld [vmem:[%s2 + $0x430] sm:$0xff]
  %v164 = vld [vmem:[%s2 + $0x438] sm:$0xff]
  %v165 = vld [vmem:[%s2 + $0x440] sm:$0xff]
  %v166 = vld [vmem:[%s2 + $0x448] sm:$0xff]
  %v167 = vld [vmem:[%s2 + $0x450] sm:$0xff]
  %v168 = vld [vmem:[%s2 + $0x458] sm:$0xff]
  %v169 = vld [vmem:[%s2 + $0x460] sm:$0xff]
  %v170 = vld [vmem:[%s2 + $0x468] sm:$0xff]
  %v171 = vld [vmem:[%s2 + $0x470] sm:$0xff]
  %v172 = vld [vmem:[%s2 + $0x478] sm:$0xff]
  %v173 = vld [vmem:[%s2 + $0x480] sm:$0xff]
  %v174 = vld [vmem:[%s2 + $0x488] sm:$0xff]
  %v175 = vld [vmem:[%s2 + $0x490] sm:$0xff]
  %v176 = vld [vmem:[%s1] sm:$0x3]
  %v177 = vld [vmem:[%s3] sm:$0xff]
  %v178 = vld [vmem:[%s3 + $0x8] sm:$0x3]
  %vm179 = vcmask 80896
  %v181 = vsel %vm179, %v176, 0
  %vm183 = vcmask 1041408
  %v185 = vsel %vm183, %v178, 0
  %187 = vmatpush.msra.mxu0 0.0
  %188 = vmatpush.msra.mxu0 0.0
  %189 = vmatpush.msra.mxu0 0.0
  %190 = vmatpush.msra.mxu0 0.0
  %191 = vmatpush.msra.mxu0 0.0
  %192 = vmatpush.msra.mxu0 0.0
  %193 = vmatpush.msra.mxu0 0.0
  %194 = vmatpush.msra.mxu0 0.0
  %195 = vmatpush.msra.mxu0 0.0
  %196 = vmatpush.msra.mxu0 0.0
  %197 = vmatpush.msra.mxu0 0.0
  %198 = vmatpush.msra.mxu0 0.0
  %199 = vmatpush.msra.mxu0 0.0
  %200 = vmatpush.msra.mxu0 0.0
  %201 = vmatpush.msra.mxu0 %v185
  %202 = vmatpush.msra.mxu0 %v177
  %203 = vmatmul.f32.gmra.mxu0 %v181
  %v204 = vpop.f32.mrf.mxu0
  %v205 = vadd.f32 0.0, %v204
  %206 = vdwg.mxu0
  %210 = vst [vmem:[#allocation1] ss:$4 sm:$0xff] %v26
  %s211 = scalar_lea.vmem [#allocation1], 32
  %212 = vst [vmem:[%s211] ss:$4 sm:$0xff] %v27
  %v213 = vld.sshfl [vmem:[#allocation1] sm:$0xff pattern:$0x73625140]
  %v214 = vld.sshfl [vmem:[#allocation1 + $0x8] sm:$0xff pattern:$0x73625140]
  %v215 = vld.sshfl [vmem:[#allocation1 + $0x10] sm:$0xff pattern:$0x73625140]
  %v216 = vld.sshfl [vmem:[#allocation1 + $0x18] sm:$0xff pattern:$0x73625140]
  %v217 = vld.sshfl [vmem:[#allocation1 + $0x20] sm:$0xff pattern:$0x73625140]
  %v218 = vld.sshfl [vmem:[#allocation1 + $0x28] sm:$0xff pattern:$0x73625140]
  %v219 = vld.sshfl [vmem:[#allocation1 + $0x30] sm:$0xff pattern:$0x73625140]
  %v220 = vld.sshfl [vmem:[#allocation1 + $0x38] sm:$0xff pattern:$0x73625140]
  %221 = vst [vmem:[#allocation1] ss:$4 sm:$0xff] %v28
  %v222 = vld.sshfl [vmem:[#allocation1] sm:$0xff pattern:$0x73625140]
  %v223 = vld.sshfl [vmem:[#allocation1 + $0x8] sm:$0xff pattern:$0x73625140]
  %vm233 = vcmask 195584
  %v234 = vsel %vm233, %v223, 0
  %236 = vmatpush.msra.mxu0 %v44
  %237 = vmatpush.msra.mxu0 %v43
  %238 = vmatpush.msra.mxu0 %v42
  %239 = vmatpush.msra.mxu0 %v41
  %240 = vmatpush.msra.mxu0 %v40
  %241 = vmatpush.msra.mxu0 %v39
  %242 = vmatpush.msra.mxu0 %v38
  %243 = vmatpush.msra.mxu0 %v37
  %244 = vmatpush.msra.mxu0 %v36
  %245 = vmatpush.msra.mxu0 %v35
  %246 = vmatpush.msra.mxu0 %v34
  %247 = vmatpush.msra.mxu0 %v33
  %248 = vmatpush.msra.mxu0 %v32
  %249 = vmatpush.msra.mxu0 %v31
  %250 = vmatpush.msra.mxu0 %v30
  %251 = vmatpush.msra.mxu0 %v29
  %252 = vmatmul.f32.gmra.mxu0 %v213
  %v253 = vpop.f32.mrf.mxu0
  %v254 = vadd.f32 %v205, %v253
  %255 = vdwg.mxu0
  %256 = vmatpush.msra.mxu0 %v60
  %257 = vmatpush.msra.mxu0 %v59
  %258 = vmatpush.msra.mxu0 %v58
  %259 = vmatpush.msra.mxu0 %v57
  %260 = vmatpush.msra.mxu0 %v56
  %261 = vmatpush.msra.mxu0 %v55
  %262 = vmatpush.msra.mxu0 %v54
  %263 = vmatpush.msra.mxu0 %v53
  %264 = vmatpush.msra.mxu0 %v52
  %265 = vmatpush.msra.mxu0 %v51
  %266 = vmatpush.msra.mxu0 %v50
  %267 = vmatpush.msra.mxu0 %v49
  %268 = vmatpush.msra.mxu0 %v48
  %269 = vmatpush.msra.mxu0 %v47
  %270 = vmatpush.msra.mxu0 %v46
  %271 = vmatpush.msra.mxu0 %v45
  %272 = vmatmul.f32.gmra.mxu0 %v214
  %v273 = vpop.f32.mrf.mxu0
  %v274 = vadd.f32 %v254, %v273
  %275 = vdwg.mxu0
  %276 = vmatpush.msra.mxu0 %v76
  %277 = vmatpush.msra.mxu0 %v75
  %278 = vmatpush.msra.mxu0 %v74
  %279 = vmatpush.msra.mxu0 %v73
  %280 = vmatpush.msra.mxu0 %v72
  %281 = vmatpush.msra.mxu0 %v71
  %282 = vmatpush.msra.mxu0 %v70
  %283 = vmatpush.msra.mxu0 %v69
  %284 = vmatpush.msra.mxu0 %v68
  %285 = vmatpush.msra.mxu0 %v67
  %286 = vmatpush.msra.mxu0 %v66
  %287 = vmatpush.msra.mxu0 %v65
  %288 = vmatpush.msra.mxu0 %v64
  %289 = vmatpush.msra.mxu0 %v63
  %290 = vmatpush.msra.mxu0 %v62
  %291 = vmatpush.msra.mxu0 %v61
  %292 = vmatmul.f32.gmra.mxu0 %v215
  %v293 = vpop.f32.mrf.mxu0
  %v294 = vadd.f32 %v274, %v293
  %295 = vdwg.mxu0
  %296 = vmatpush.msra.mxu0 %v92
  %297 = vmatpush.msra.mxu0 %v91
  %298 = vmatpush.msra.mxu0 %v90
  %299 = vmatpush.msra.mxu0 %v89
  %300 = vmatpush.msra.mxu0 %v88
  %301 = vmatpush.msra.mxu0 %v87
  %302 = vmatpush.msra.mxu0 %v86
  %303 = vmatpush.msra.mxu0 %v85
  %304 = vmatpush.msra.mxu0 %v84
  %305 = vmatpush.msra.mxu0 %v83
  %306 = vmatpush.msra.mxu0 %v82
  %307 = vmatpush.msra.mxu0 %v81
  %308 = vmatpush.msra.mxu0 %v80
  %309 = vmatpush.msra.mxu0 %v79
  %310 = vmatpush.msra.mxu0 %v78
  %311 = vmatpush.msra.mxu0 %v77
  %312 = vmatmul.f32.gmra.mxu0 %v216
  %v313 = vpop.f32.mrf.mxu0
  %v314 = vadd.f32 %v294, %v313
  %315 = vdwg.mxu0
  %316 = vmatpush.msra.mxu0 %v108
  %317 = vmatpush.msra.mxu0 %v107
  %318 = vmatpush.msra.mxu0 %v106
  %319 = vmatpush.msra.mxu0 %v105
  %320 = vmatpush.msra.mxu0 %v104
  %321 = vmatpush.msra.mxu0 %v103
  %322 = vmatpush.msra.mxu0 %v102
  %323 = vmatpush.msra.mxu0 %v101
  %324 = vmatpush.msra.mxu0 %v100
  %325 = vmatpush.msra.mxu0 %v99
  %326 = vmatpush.msra.mxu0 %v98
  %327 = vmatpush.msra.mxu0 %v97
  %328 = vmatpush.msra.mxu0 %v96
  %329 = vmatpush.msra.mxu0 %v95
  %330 = vmatpush.msra.mxu0 %v94
  %331 = vmatpush.msra.mxu0 %v93
  %332 = vmatmul.f32.gmra.mxu0 %v217
  %v333 = vpop.f32.mrf.mxu0
  %v334 = vadd.f32 %v314, %v333
  %335 = vdwg.mxu0
  %336 = vmatpush.msra.mxu0 %v124
  %337 = vmatpush.msra.mxu0 %v123
  %338 = vmatpush.msra.mxu0 %v122
  %339 = vmatpush.msra.mxu0 %v121
  %340 = vmatpush.msra.mxu0 %v120
  %341 = vmatpush.msra.mxu0 %v119
  %342 = vmatpush.msra.mxu0 %v118
  %343 = vmatpush.msra.mxu0 %v117
  %344 = vmatpush.msra.mxu0 %v116
  %345 = vmatpush.msra.mxu0 %v115
  %346 = vmatpush.msra.mxu0 %v114
  %347 = vmatpush.msra.mxu0 %v113
  %348 = vmatpush.msra.mxu0 %v112
  %349 = vmatpush.msra.mxu0 %v111
  %350 = vmatpush.msra.mxu0 %v110
  %351 = vmatpush.msra.mxu0 %v109
  %352 = vmatmul.f32.gmra.mxu0 %v218
  %v353 = vpop.f32.mrf.mxu0
  %v354 = vadd.f32 %v334, %v353
  %355 = vdwg.mxu0
  %356 = vmatpush.msra.mxu0 %v140
  %357 = vmatpush.msra.mxu0 %v139
  %358 = vmatpush.msra.mxu0 %v138
  %359 = vmatpush.msra.mxu0 %v137
  %360 = vmatpush.msra.mxu0 %v136
  %361 = vmatpush.msra.mxu0 %v135
  %362 = vmatpush.msra.mxu0 %v134
  %363 = vmatpush.msra.mxu0 %v133
  %364 = vmatpush.msra.mxu0 %v132
  %365 = vmatpush.msra.mxu0 %v131
  %366 = vmatpush.msra.mxu0 %v130
  %367 = vmatpush.msra.mxu0 %v129
  %368 = vmatpush.msra.mxu0 %v128
  %369 = vmatpush.msra.mxu0 %v127
  %370 = vmatpush.msra.mxu0 %v126
  %371 = vmatpush.msra.mxu0 %v125
  %372 = vmatmul.f32.gmra.mxu0 %v219
  %v373 = vpop.f32.mrf.mxu0
  %v374 = vadd.f32 %v354, %v373
  %375 = vdwg.mxu0
  %376 = vmatpush.msra.mxu0 %v156
  %377 = vmatpush.msra.mxu0 %v155
  %378 = vmatpush.msra.mxu0 %v154
  %379 = vmatpush.msra.mxu0 %v153
  %380 = vmatpush.msra.mxu0 %v152
  %381 = vmatpush.msra.mxu0 %v151
  %382 = vmatpush.msra.mxu0 %v150
  %383 = vmatpush.msra.mxu0 %v149
  %384 = vmatpush.msra.mxu0 %v148
  %385 = vmatpush.msra.mxu0 %v147
  %386 = vmatpush.msra.mxu0 %v146
  %387 = vmatpush.msra.mxu0 %v145
  %388 = vmatpush.msra.mxu0 %v144
  %389 = vmatpush.msra.mxu0 %v143
  %390 = vmatpush.msra.mxu0 %v142
  %391 = vmatpush.msra.mxu0 %v141
  %392 = vmatmul.f32.gmra.mxu0 %v220
  %v393 = vpop.f32.mrf.mxu0
  %v394 = vadd.f32 %v374, %v393
  %395 = vdwg.mxu0
  %396 = vmatpush.msra.mxu0 %v172
  %397 = vmatpush.msra.mxu0 %v171
  %398 = vmatpush.msra.mxu0 %v170
  %399 = vmatpush.msra.mxu0 %v169
  %400 = vmatpush.msra.mxu0 %v168
  %401 = vmatpush.msra.mxu0 %v167
  %402 = vmatpush.msra.mxu0 %v166
  %403 = vmatpush.msra.mxu0 %v165
  %404 = vmatpush.msra.mxu0 %v164
  %405 = vmatpush.msra.mxu0 %v163
  %406 = vmatpush.msra.mxu0 %v162
  %407 = vmatpush.msra.mxu0 %v161
  %408 = vmatpush.msra.mxu0 %v160
  %409 = vmatpush.msra.mxu0 %v159
  %410 = vmatpush.msra.mxu0 %v158
  %411 = vmatpush.msra.mxu0 %v157
  %412 = vmatmul.f32.gmra.mxu0 %v222
  %v413 = vpop.f32.mrf.mxu0
  %v414 = vadd.f32 %v394, %v413
  %415 = vdwg.mxu0
  %416 = vmatpush.msra.mxu0 0.0
  %417 = vmatpush.msra.mxu0 0.0
  %418 = vmatpush.msra.mxu0 0.0
  %419 = vmatpush.msra.mxu0 0.0
  %420 = vmatpush.msra.mxu0 0.0
  %421 = vmatpush.msra.mxu0 0.0
  %422 = vmatpush.msra.mxu0 0.0
  %423 = vmatpush.msra.mxu0 0.0
  %424 = vmatpush.msra.mxu0 0.0
  %425 = vmatpush.msra.mxu0 0.0
  %426 = vmatpush.msra.mxu0 0.0
  %427 = vmatpush.msra.mxu0 0.0
  %428 = vmatpush.msra.mxu0 0.0
  %429 = vmatpush.msra.mxu0 %v175
  %430 = vmatpush.msra.mxu0 %v174
  %431 = vmatpush.msra.mxu0 %v173
  %432 = vmatmul.f32.gmra.mxu0 %v234
  %v433 = vpop.f32.mrf.mxu0
  %v434 = vadd.f32 %v414, %v433
  %435 = vdwg.mxu0
  %v436 = vld [vmem:[%s4] sm:$0x1]
  %v438 = vperm.slane %v436, 0
  %v440 = vadd.f32 %v434, %v438
  %v441 = vmax.f32 %v440, 0.0
  %v442 = vld [vmem:[%s5] sm:$0xff]
  %v443 = vld [vmem:[%s5 + $0x8] sm:$0xff]
  %v444 = vld [vmem:[%s5 + $0x10] sm:$0xff]
  %v445 = vld [vmem:[%s5 + $0x18] sm:$0xff]
  %v446 = vld [vmem:[%s5 + $0x20] sm:$0xff]
  %v447 = vld [vmem:[%s5 + $0x28] sm:$0xff]
  %v448 = vld [vmem:[%s5 + $0x30] sm:$0xff]
  %v449 = vld [vmem:[%s5 + $0x38] sm:$0xff]
  %v450 = vld [vmem:[%s6] sm:$0x1]
  %v452 = vperm.slane %v450, 0
  %vm454 = vcmask 523264
  %v456 = vsel %vm454, %v441, 0
  %458 = vmatpush.msra.mxu0 0.0
  %459 = vmatpush.msra.mxu0 0.0
  %460 = vmatpush.msra.mxu0 0.0
  %461 = vmatpush.msra.mxu0 0.0
  %462 = vmatpush.msra.mxu0 0.0
  %463 = vmatpush.msra.mxu0 0.0
  %464 = vmatpush.msra.mxu0 0.0
  %465 = vmatpush.msra.mxu0 0.0
  %466 = vmatpush.msra.mxu0 %v449
  %467 = vmatpush.msra.mxu0 %v448
  %468 = vmatpush.msra.mxu0 %v447
  %469 = vmatpush.msra.mxu0 %v446
  %470 = vmatpush.msra.mxu0 %v445
  %471 = vmatpush.msra.mxu0 %v444
  %472 = vmatpush.msra.mxu0 %v443
  %473 = vmatpush.msra.mxu0 %v442
  %474 = vmatmul.f32.gmra.mxu0 %v456
  %v475 = vpop.f32.mrf.mxu0
  %v476 = vadd.f32 %v452, %v475
  %477 = vdwg.mxu0
  %vm478 = vcmask 254976
  %479 = vst.msk [vmem:[%s7] sm:$0x3] %vm478, %v476
  // Predicated region
  $region30: #{encoder_forward.5} parent=0 // pred_check
    _
  $region31: #{encoder_forward.5} parent=0 // pred_check_branch
    %481 = sbr.rel (0) target = $region33
  $region32: #{encoder_forward.5} parent=0 // pred_region
    _
  $region33: #{encoder_forward.5} parent=0 // pred_fallthru
    _
  // Predicated region
  $region34: #{encoder_forward.5} parent=0 // pred_check
    _
  $region35: #{encoder_forward.5} parent=0 // pred_check_branch
    %483 = sbr.rel (0) target = $region37
  $region36: #{encoder_forward.5} parent=0 // pred_region
    _
  $region37: #{encoder_forward.5} parent=0 // pred_fallthru
    _

</llo_original>
